<compile_context>
chip_gen: v7x
topology: tpu7x:2x2x1
jax: 0.10.0
libtpu: 0.0.40
codegen_flags: <defaults>
</compile_context>

<pallas_src>
import functools

import jax
import jax.numpy as jnp
from jax.experimental import pallas as pl
from jax.experimental.pallas import tpu as pltpu


def _fused_conv_bn_relu_kernel(x_ref, wb_ref, sel_ref, selT_ref, gamma_ref,
                               beta_ref, o_ref, *, eps):
    # x_ref    : (N, H+4, (W+4)*Cin)   padded input, lane-dense fused minor axis
    # wb_ref   : (5, (W+4)*Cin, W*Cout) block-Toeplitz weights (one slab per kernel row)
    # sel_ref  : (W*Cout, Cout)        fused-column -> channel one-hot selector
    # selT_ref : (Cout, W*Cout)        channel -> fused-column broadcaster (sel^T)
    # gamma_ref, beta_ref : (1, Cout)
    # o_ref    : (N, H, W*Cout)        lane-dense fused output
    N = o_ref.shape[0]
    H = o_ref.shape[1]
    WC = o_ref.shape[2]
    Cout = gamma_ref.shape[1]
    W = WC // Cout

    # ---- conv5x5: per batch element, 5 lane-dense MXU matmuls (one per kernel row kh) ----
    # conv[n][h, w*Cout + co] = sum_{kh,kw,ci} x_pad[n, h+kh, w+kw, ci] * weight[kh,kw,ci,co]
    convs = []
    row_sum = jnp.zeros((1, WC), dtype=jnp.float32)
    for n in range(N):                                   # static unroll, tiny batch
        acc = jnp.dot(x_ref[n, 0:H, :], wb_ref[0],
                      preferred_element_type=jnp.float32)
        for kh in range(1, 5):                           # static unroll
            acc = acc + jnp.dot(x_ref[n, kh:kh + H, :], wb_ref[kh],
                                preferred_element_type=jnp.float32)
        convs.append(acc)                                # (H, WC) f32, stays on-chip
        row_sum = row_sum + jnp.sum(acc, axis=0, keepdims=True)

    # ---- BatchNorm2d, training-mode batch statistics (two-pass, biased var) + ReLU ----
    count = float(N * H * W)
    mean_c = jnp.dot(row_sum, sel_ref[...],
                     preferred_element_type=jnp.float32) / count        # (1, Cout)
    mean_f = jnp.dot(mean_c, selT_ref[...],
                     preferred_element_type=jnp.float32)                # (1, WC)

    sq_sum = jnp.zeros((1, WC), dtype=jnp.float32)
    for n in range(N):
        centered = convs[n] - mean_f
        sq_sum = sq_sum + jnp.sum(centered * centered, axis=0, keepdims=True)
    var_c = jnp.dot(sq_sum, sel_ref[...],
                    preferred_element_type=jnp.float32) / count         # (1, Cout) biased

    scale_c = gamma_ref[...] * jax.lax.rsqrt(var_c + eps)               # (1, Cout)
    shift_c = beta_ref[...] - mean_c * scale_c
    scale_f = jnp.dot(scale_c, selT_ref[...], preferred_element_type=jnp.float32)
    shift_f = jnp.dot(shift_c, selT_ref[...], preferred_element_type=jnp.float32)

    for n in range(N):                                   # full-width (128-lane) stores
        o_ref[n, :, :] = jnp.maximum(convs[n] * scale_f + shift_f,
                                     0.0).astype(o_ref.dtype)


def rese_start_part(x_nchw, weight_hwio, gamma, beta, eps=1e-5):
    """conv5x5(stride 1, pad 2, no bias) -> BatchNorm2d (training-mode batch stats,
    PyTorch default) -> ReLU. Input/output are NCHW; compute happens in a single
    lane-dense fused-NHWC Pallas kernel."""
    x = jnp.transpose(x_nchw, (0, 2, 3, 1)).astype(jnp.float32)          # NHWC (glue)
    N, H, W, Cin = x.shape
    KH, KW, _, Cout = weight_hwio.shape
    assert (KH, KW) == (5, 5)

    # padding=2 on both spatial dims, then fuse (W+4, Cin) into one lane-dense axis.
    x_pad = jnp.pad(x, ((0, 0), (2, 2), (2, 2), (0, 0)))
    x_fused = x_pad.reshape(N, H + 4, (W + 4) * Cin)

    # Block-Toeplitz weights: wb[kh, (w+kw)*Cin + ci, w*Cout + co] = weight[kh,kw,ci,co]
    wf = weight_hwio.astype(jnp.float32)
    shift = (jnp.arange(KW)[:, None, None] + jnp.arange(W)[None, :, None]
             == jnp.arange(W + 4)[None, None, :]).astype(jnp.float32)    # (KW, W, W+4)
    wb = jnp.einsum('kwp,hkio->hpiwo', shift, wf).reshape(
        KH, (W + 4) * Cin, W * Cout)

    # fused-column <-> channel maps (tiny one-hot matrices for the BN reductions)
    sel = jnp.tile(jnp.eye(Cout, dtype=jnp.float32), (W, 1))             # (W*Cout, Cout)
    selT = sel.T                                                         # (Cout, W*Cout)

    gamma2 = gamma.astype(jnp.float32).reshape(1, Cout)
    beta2 = beta.astype(jnp.float32).reshape(1, Cout)

    kernel = functools.partial(_fused_conv_bn_relu_kernel, eps=float(eps))

    out_fused = pl.pallas_call(
        kernel,
        out_shape=jax.ShapeDtypeStruct((N, H, W * Cout), jnp.float32),
        grid=(1,),
        in_specs=[
            pl.BlockSpec((N, H + 4, (W + 4) * Cin), lambda i: (0, 0, 0)),
            pl.BlockSpec((KH, (W + 4) * Cin, W * Cout), lambda i: (0, 0, 0)),
            pl.BlockSpec((W * Cout, Cout), lambda i: (0, 0)),
            pl.BlockSpec((Cout, W * Cout), lambda i: (0, 0)),
            pl.BlockSpec((1, Cout), lambda i: (0, 0)),
            pl.BlockSpec((1, Cout), lambda i: (0, 0)),
        ],
        out_specs=pl.BlockSpec((N, H, W * Cout), lambda i: (0, 0, 0)),
        compiler_params=pltpu.CompilerParams(
            dimension_semantics=("arbitrary",)),
    )(x_fused, wb, sel, selT, gamma2, beta2)

    out = out_fused.reshape(N, H, W, Cout)
    return jnp.transpose(out, (0, 3, 1, 2))                              # back to NCHW


def _reference(x_nchw, weight_hwio, gamma, beta, eps=1e-5):
    """Pure-JAX reference: conv5x5 -> training-mode BN (biased var) -> ReLU."""
    x = jnp.transpose(x_nchw, (0, 2, 3, 1)).astype(jnp.float32)
    conv = jax.lax.conv_general_dilated(
        x, weight_hwio.astype(jnp.float32),
        window_strides=(1, 1), padding=((2, 2), (2, 2)),
        dimension_numbers=('NHWC', 'HWIO', 'NHWC'),
        precision=jax.lax.Precision.HIGHEST)
    mean = jnp.mean(conv, axis=(0, 1, 2))
    var = jnp.mean((conv - mean) ** 2, axis=(0, 1, 2))
    y = (conv - mean) / jnp.sqrt(var + eps) * gamma + beta
    y = jnp.maximum(y, 0.0)
    return jnp.transpose(y, (0, 3, 1, 2))


if __name__ == "__main__":
    # Small deterministic example consistent with the module: in_ch=4, out_ch=8.
    N, Cin, Cout, H, W = 2, 4, 8, 16, 16

    key = jax.random.PRNGKey(0)
    kx, kw, kg, kb = jax.random.split(key, 4)
    x = jax.random.normal(kx, (N, Cin, H, W), dtype=jnp.float32)               # NCHW input
    weight = 0.1 * jax.random.normal(kw, (5, 5, Cin, Cout), dtype=jnp.float32)  # HWIO
    gamma = 1.0 + 0.1 * jax.random.normal(kg, (Cout,), dtype=jnp.float32)
    beta = 0.1 * jax.random.normal(kb, (Cout,), dtype=jnp.float32)

    y = rese_start_part(x, weight, gamma, beta)
    jax.block_until_ready(y)
    assert y.shape == (N, Cout, H, W)

    # Sanity check against the pure-JAX reference (loose tolerance for MXU precision).
    y_ref = _reference(x, weight, gamma, beta)
    err = float(jnp.max(jnp.abs(y - y_ref)))
    assert err < 5e-2, f"max abs error vs reference: {err}"
    print("KERNEL_OK")
</pallas_src>

<mosaic_0001>
module attributes {stable_mosaic.version = 11 : i64} {
  func.func @_fused_conv_bn_relu_kernel(%arg0: i32, %arg1: memref<2x20x80xf32, #tpu.memory_space<vmem>>, %arg2: memref<5x80x128xf32, #tpu.memory_space<vmem>>, %arg3: memref<128x8xf32, #tpu.memory_space<vmem>>, %arg4: memref<8x128xf32, #tpu.memory_space<vmem>>, %arg5: memref<1x8xf32, #tpu.memory_space<vmem>>, %arg6: memref<1x8xf32, #tpu.memory_space<vmem>>, %arg7: memref<2x16x128xf32, #tpu.memory_space<vmem>>) attributes {dimension_semantics = [#tpu.dimension_semantics<arbitrary>], iteration_bounds = array<i64: 1>, scalar_prefetch = 0 : i64, scratch_operands = 0 : i64, tpu.core_type = #tpu.core_type<tc>, window_params = [{pipeline_mode = #tpu.pipeline_mode<synchronous>, transform_indices = @transform_0, window_bounds = array<i64: 2, 20, 80>}, {pipeline_mode = #tpu.pipeline_mode<synchronous>, transform_indices = @transform_1, window_bounds = array<i64: 5, 80, 128>}, {pipeline_mode = #tpu.pipeline_mode<synchronous>, transform_indices = @transform_2, window_bounds = array<i64: 128, 8>}, {pipeline_mode = #tpu.pipeline_mode<synchronous>, transform_indices = @transform_3, window_bounds = array<i64: 8, 128>}, {pipeline_mode = #tpu.pipeline_mode<synchronous>, transform_indices = @transform_4, window_bounds = array<i64: 1, 8>}, {pipeline_mode = #tpu.pipeline_mode<synchronous>, transform_indices = @transform_5, window_bounds = array<i64: 1, 8>}, {pipeline_mode = #tpu.pipeline_mode<synchronous>, transform_indices = @transform_6, window_bounds = array<i64: 2, 16, 128>}]} {
    %cst = arith.constant 0.000000e+00 : f32
    %0 = vector.broadcast %cst : f32 to vector<1x128xf32>
    %c0 = arith.constant 0 : index
    %c0_0 = arith.constant 0 : index
    %c0_1 = arith.constant 0 : index
    %1 = vector.load %arg1[%c0, %c0_0, %c0_1] : memref<2x20x80xf32, #tpu.memory_space<vmem>>, vector<1x16x80xf32>
    %2 = vector.shape_cast %1 : vector<1x16x80xf32> to vector<16x80xf32>
    %c0_2 = arith.constant 0 : index
    %c0_3 = arith.constant 0 : index
    %c0_4 = arith.constant 0 : index
    %3 = vector.load %arg2[%c0_2, %c0_3, %c0_4] : memref<5x80x128xf32, #tpu.memory_space<vmem>>, vector<1x80x128xf32>
    %4 = vector.shape_cast %3 : vector<1x80x128xf32> to vector<80x128xf32>
    %cst_5 = arith.constant dense<0.000000e+00> : vector<16x128xf32>
    %5 = tpu.matmul %2, %4, %cst_5 {dimension_numbers = #tpu.dot_dimension_numbers<[1], [0], [0], [1], [0, 0, 1, 1], [], []>} : vector<16x80xf32>, vector<80x128xf32>, vector<16x128xf32> -> vector<16x128xf32>
    %c0_6 = arith.constant 0 : index
    %c1 = arith.constant 1 : index
    %c0_7 = arith.constant 0 : index
    %6 = vector.load %arg1[%c0_6, %c1, %c0_7] : memref<2x20x80xf32, #tpu.memory_space<vmem>>, vector<1x16x80xf32>
    %7 = vector.shape_cast %6 : vector<1x16x80xf32> to vector<16x80xf32>
    %c1_8 = arith.constant 1 : index
    %c0_9 = arith.constant 0 : index
    %c0_10 = arith.constant 0 : index
    %8 = vector.load %arg2[%c1_8, %c0_9, %c0_10] : memref<5x80x128xf32, #tpu.memory_space<vmem>>, vector<1x80x128xf32>
    %9 = vector.shape_cast %8 : vector<1x80x128xf32> to vector<80x128xf32>
    %cst_11 = arith.constant dense<0.000000e+00> : vector<16x128xf32>
    %10 = tpu.matmul %7, %9, %cst_11 {dimension_numbers = #tpu.dot_dimension_numbers<[1], [0], [0], [1], [0, 0, 1, 1], [], []>} : vector<16x80xf32>, vector<80x128xf32>, vector<16x128xf32> -> vector<16x128xf32>
    %11 = arith.addf %5, %10 : vector<16x128xf32>
    %c0_12 = arith.constant 0 : index
    %c2 = arith.constant 2 : index
    %c0_13 = arith.constant 0 : index
    %12 = vector.load %arg1[%c0_12, %c2, %c0_13] : memref<2x20x80xf32, #tpu.memory_space<vmem>>, vector<1x16x80xf32>
    %13 = vector.shape_cast %12 : vector<1x16x80xf32> to vector<16x80xf32>
    %c2_14 = arith.constant 2 : index
    %c0_15 = arith.constant 0 : index
    %c0_16 = arith.constant 0 : index
    %14 = vector.load %arg2[%c2_14, %c0_15, %c0_16] : memref<5x80x128xf32, #tpu.memory_space<vmem>>, vector<1x80x128xf32>
    %15 = vector.shape_cast %14 : vector<1x80x128xf32> to vector<80x128xf32>
    %cst_17 = arith.constant dense<0.000000e+00> : vector<16x128xf32>
    %16 = tpu.matmul %13, %15, %cst_17 {dimension_numbers = #tpu.dot_dimension_numbers<[1], [0], [0], [1], [0, 0, 1, 1], [], []>} : vector<16x80xf32>, vector<80x128xf32>, vector<16x128xf32> -> vector<16x128xf32>
    %17 = arith.addf %11, %16 : vector<16x128xf32>
    %c0_18 = arith.constant 0 : index
    %c3 = arith.constant 3 : index
    %c0_19 = arith.constant 0 : index
    %18 = vector.load %arg1[%c0_18, %c3, %c0_19] : memref<2x20x80xf32, #tpu.memory_space<vmem>>, vector<1x16x80xf32>
    %19 = vector.shape_cast %18 : vector<1x16x80xf32> to vector<16x80xf32>
    %c3_20 = arith.constant 3 : index
    %c0_21 = arith.constant 0 : index
    %c0_22 = arith.constant 0 : index
    %20 = vector.load %arg2[%c3_20, %c0_21, %c0_22] : memref<5x80x128xf32, #tpu.memory_space<vmem>>, vector<1x80x128xf32>
    %21 = vector.shape_cast %20 : vector<1x80x128xf32> to vector<80x128xf32>
    %cst_23 = arith.constant dense<0.000000e+00> : vector<16x128xf32>
    %22 = tpu.matmul %19, %21, %cst_23 {dimension_numbers = #tpu.dot_dimension_numbers<[1], [0], [0], [1], [0, 0, 1, 1], [], []>} : vector<16x80xf32>, vector<80x128xf32>, vector<16x128xf32> -> vector<16x128xf32>
    %23 = arith.addf %17, %22 : vector<16x128xf32>
    %c0_24 = arith.constant 0 : index
    %c4 = arith.constant 4 : index
    %c0_25 = arith.constant 0 : index
    %24 = vector.load %arg1[%c0_24, %c4, %c0_25] : memref<2x20x80xf32, #tpu.memory_space<vmem>>, vector<1x16x80xf32>
    %25 = vector.shape_cast %24 : vector<1x16x80xf32> to vector<16x80xf32>
    %c4_26 = arith.constant 4 : index
    %c0_27 = arith.constant 0 : index
    %c0_28 = arith.constant 0 : index
    %26 = vector.load %arg2[%c4_26, %c0_27, %c0_28] : memref<5x80x128xf32, #tpu.memory_space<vmem>>, vector<1x80x128xf32>
    %27 = vector.shape_cast %26 : vector<1x80x128xf32> to vector<80x128xf32>
    %cst_29 = arith.constant dense<0.000000e+00> : vector<16x128xf32>
    %28 = tpu.matmul %25, %27, %cst_29 {dimension_numbers = #tpu.dot_dimension_numbers<[1], [0], [0], [1], [0, 0, 1, 1], [], []>} : vector<16x80xf32>, vector<80x128xf32>, vector<16x128xf32> -> vector<16x128xf32>
    %29 = arith.addf %23, %28 : vector<16x128xf32>
    %cst_30 = arith.constant dense<0.000000e+00> : vector<128xf32>
    %30 = vector.multi_reduction <add>, %29, %cst_30 [0] : vector<16x128xf32> to vector<128xf32>
    %31 = vector.shape_cast %30 : vector<128xf32> to vector<1x128xf32>
    %32 = arith.addf %0, %31 : vector<1x128xf32>
    %c1_31 = arith.constant 1 : index
    %c0_32 = arith.constant 0 : index
    %c0_33 = arith.constant 0 : index
    %33 = vector.load %arg1[%c1_31, %c0_32, %c0_33] : memref<2x20x80xf32, #tpu.memory_space<vmem>>, vector<1x16x80xf32>
    %34 = vector.shape_cast %33 : vector<1x16x80xf32> to vector<16x80xf32>
    %c0_34 = arith.constant 0 : index
    %c0_35 = arith.constant 0 : index
    %c0_36 = arith.constant 0 : index
    %35 = vector.load %arg2[%c0_34, %c0_35, %c0_36] : memref<5x80x128xf32, #tpu.memory_space<vmem>>, vector<1x80x128xf32>
    %36 = vector.shape_cast %35 : vector<1x80x128xf32> to vector<80x128xf32>
    %cst_37 = arith.constant dense<0.000000e+00> : vector<16x128xf32>
    %37 = tpu.matmul %34, %36, %cst_37 {dimension_numbers = #tpu.dot_dimension_numbers<[1], [0], [0], [1], [0, 0, 1, 1], [], []>} : vector<16x80xf32>, vector<80x128xf32>, vector<16x128xf32> -> vector<16x128xf32>
    %c1_38 = arith.constant 1 : index
    %c1_39 = arith.constant 1 : index
    %c0_40 = arith.constant 0 : index
    %38 = vector.load %arg1[%c1_38, %c1_39, %c0_40] : memref<2x20x80xf32, #tpu.memory_space<vmem>>, vector<1x16x80xf32>
    %39 = vector.shape_cast %38 : vector<1x16x80xf32> to vector<16x80xf32>
    %c1_41 = arith.constant 1 : index
    %c0_42 = arith.constant 0 : index
    %c0_43 = arith.constant 0 : index
    %40 = vector.load %arg2[%c1_41, %c0_42, %c0_43] : memref<5x80x128xf32, #tpu.memory_space<vmem>>, vector<1x80x128xf32>
    %41 = vector.shape_cast %40 : vector<1x80x128xf32> to vector<80x128xf32>
    %cst_44 = arith.constant dense<0.000000e+00> : vector<16x128xf32>
    %42 = tpu.matmul %39, %41, %cst_44 {dimension_numbers = #tpu.dot_dimension_numbers<[1], [0], [0], [1], [0, 0, 1, 1], [], []>} : vector<16x80xf32>, vector<80x128xf32>, vector<16x128xf32> -> vector<16x128xf32>
    %43 = arith.addf %37, %42 : vector<16x128xf32>
    %c1_45 = arith.constant 1 : index
    %c2_46 = arith.constant 2 : index
    %c0_47 = arith.constant 0 : index
    %44 = vector.load %arg1[%c1_45, %c2_46, %c0_47] : memref<2x20x80xf32, #tpu.memory_space<vmem>>, vector<1x16x80xf32>
    %45 = vector.shape_cast %44 : vector<1x16x80xf32> to vector<16x80xf32>
    %c2_48 = arith.constant 2 : index
    %c0_49 = arith.constant 0 : index
    %c0_50 = arith.constant 0 : index
    %46 = vector.load %arg2[%c2_48, %c0_49, %c0_50] : memref<5x80x128xf32, #tpu.memory_space<vmem>>, vector<1x80x128xf32>
    %47 = vector.shape_cast %46 : vector<1x80x128xf32> to vector<80x128xf32>
    %cst_51 = arith.constant dense<0.000000e+00> : vector<16x128xf32>
    %48 = tpu.matmul %45, %47, %cst_51 {dimension_numbers = #tpu.dot_dimension_numbers<[1], [0], [0], [1], [0, 0, 1, 1], [], []>} : vector<16x80xf32>, vector<80x128xf32>, vector<16x128xf32> -> vector<16x128xf32>
    %49 = arith.addf %43, %48 : vector<16x128xf32>
    %c1_52 = arith.constant 1 : index
    %c3_53 = arith.constant 3 : index
    %c0_54 = arith.constant 0 : index
    %50 = vector.load %arg1[%c1_52, %c3_53, %c0_54] : memref<2x20x80xf32, #tpu.memory_space<vmem>>, vector<1x16x80xf32>
    %51 = vector.shape_cast %50 : vector<1x16x80xf32> to vector<16x80xf32>
    %c3_55 = arith.constant 3 : index
    %c0_56 = arith.constant 0 : index
    %c0_57 = arith.constant 0 : index
    %52 = vector.load %arg2[%c3_55, %c0_56, %c0_57] : memref<5x80x128xf32, #tpu.memory_space<vmem>>, vector<1x80x128xf32>
    %53 = vector.shape_cast %52 : vector<1x80x128xf32> to vector<80x128xf32>
    %cst_58 = arith.constant dense<0.000000e+00> : vector<16x128xf32>
    %54 = tpu.matmul %51, %53, %cst_58 {dimension_numbers = #tpu.dot_dimension_numbers<[1], [0], [0], [1], [0, 0, 1, 1], [], []>} : vector<16x80xf32>, vector<80x128xf32>, vector<16x128xf32> -> vector<16x128xf32>
    %55 = arith.addf %49, %54 : vector<16x128xf32>
    %c1_59 = arith.constant 1 : index
    %c4_60 = arith.constant 4 : index
    %c0_61 = arith.constant 0 : index
    %56 = vector.load %arg1[%c1_59, %c4_60, %c0_61] : memref<2x20x80xf32, #tpu.memory_space<vmem>>, vector<1x16x80xf32>
    %57 = vector.shape_cast %56 : vector<1x16x80xf32> to vector<16x80xf32>
    %c4_62 = arith.constant 4 : index
    %c0_63 = arith.constant 0 : index
    %c0_64 = arith.constant 0 : index
    %58 = vector.load %arg2[%c4_62, %c0_63, %c0_64] : memref<5x80x128xf32, #tpu.memory_space<vmem>>, vector<1x80x128xf32>
    %59 = vector.shape_cast %58 : vector<1x80x128xf32> to vector<80x128xf32>
    %cst_65 = arith.constant dense<0.000000e+00> : vector<16x128xf32>
    %60 = tpu.matmul %57, %59, %cst_65 {dimension_numbers = #tpu.dot_dimension_numbers<[1], [0], [0], [1], [0, 0, 1, 1], [], []>} : vector<16x80xf32>, vector<80x128xf32>, vector<16x128xf32> -> vector<16x128xf32>
    %61 = arith.addf %55, %60 : vector<16x128xf32>
    %cst_66 = arith.constant dense<0.000000e+00> : vector<128xf32>
    %62 = vector.multi_reduction <add>, %61, %cst_66 [0] : vector<16x128xf32> to vector<128xf32>
    %63 = vector.shape_cast %62 : vector<128xf32> to vector<1x128xf32>
    %64 = arith.addf %32, %63 : vector<1x128xf32>
    %c0_67 = arith.constant 0 : index
    %c0_68 = arith.constant 0 : index
    %65 = vector.load %arg3[%c0_67, %c0_68] : memref<128x8xf32, #tpu.memory_space<vmem>>, vector<128x8xf32>
    %cst_69 = arith.constant dense<0.000000e+00> : vector<1x8xf32>
    %66 = tpu.matmul %64, %65, %cst_69 {dimension_numbers = #tpu.dot_dimension_numbers<[1], [0], [0], [1], [0, 0, 1, 1], [], []>} : vector<1x128xf32>, vector<128x8xf32>, vector<1x8xf32> -> vector<1x8xf32>
    %cst_70 = arith.constant 5.120000e+02 : f32
    %67 = vector.broadcast %cst_70 : f32 to vector<1x8xf32>
    %68 = arith.divf %66, %67 : vector<1x8xf32>
    %c0_71 = arith.constant 0 : index
    %c0_72 = arith.constant 0 : index
    %69 = vector.load %arg4[%c0_71, %c0_72] : memref<8x128xf32, #tpu.memory_space<vmem>>, vector<8x128xf32>
    %cst_73 = arith.constant dense<0.000000e+00> : vector<1x128xf32>
    %70 = tpu.matmul %68, %69, %cst_73 {dimension_numbers = #tpu.dot_dimension_numbers<[1], [0], [0], [1], [0, 0, 1, 1], [], []>} : vector<1x8xf32>, vector<8x128xf32>, vector<1x128xf32> -> vector<1x128xf32>
    %cst_74 = arith.constant 0.000000e+00 : f32
    %71 = vector.broadcast %cst_74 : f32 to vector<1x128xf32>
    %72 = vector.broadcast %70 : vector<1x128xf32> to vector<16x128xf32>
    %73 = arith.subf %29, %72 : vector<16x128xf32>
    %74 = arith.mulf %73, %73 : vector<16x128xf32>
    %cst_75 = arith.constant dense<0.000000e+00> : vector<128xf32>
    %75 = vector.multi_reduction <add>, %74, %cst_75 [0] : vector<16x128xf32> to vector<128xf32>
    %76 = vector.shape_cast %75 : vector<128xf32> to vector<1x128xf32>
    %77 = arith.addf %71, %76 : vector<1x128xf32>
    %78 = vector.broadcast %70 : vector<1x128xf32> to vector<16x128xf32>
    %79 = arith.subf %61, %78 : vector<16x128xf32>
    %80 = arith.mulf %79, %79 : vector<16x128xf32>
    %cst_76 = arith.constant dense<0.000000e+00> : vector<128xf32>
    %81 = vector.multi_reduction <add>, %80, %cst_76 [0] : vector<16x128xf32> to vector<128xf32>
    %82 = vector.shape_cast %81 : vector<128xf32> to vector<1x128xf32>
    %83 = arith.addf %77, %82 : vector<1x128xf32>
    %c0_77 = arith.constant 0 : index
    %c0_78 = arith.constant 0 : index
    %84 = vector.load %arg3[%c0_77, %c0_78] : memref<128x8xf32, #tpu.memory_space<vmem>>, vector<128x8xf32>
    %cst_79 = arith.constant dense<0.000000e+00> : vector<1x8xf32>
    %85 = tpu.matmul %83, %84, %cst_79 {dimension_numbers = #tpu.dot_dimension_numbers<[1], [0], [0], [1], [0, 0, 1, 1], [], []>} : vector<1x128xf32>, vector<128x8xf32>, vector<1x8xf32> -> vector<1x8xf32>
    %cst_80 = arith.constant 5.120000e+02 : f32
    %86 = vector.broadcast %cst_80 : f32 to vector<1x8xf32>
    %87 = arith.divf %85, %86 : vector<1x8xf32>
    %c0_81 = arith.constant 0 : index
    %c0_82 = arith.constant 0 : index
    %88 = vector.load %arg5[%c0_81, %c0_82] : memref<1x8xf32, #tpu.memory_space<vmem>>, vector<1x8xf32>
    %cst_83 = arith.constant 9.99999974E-6 : f32
    %89 = vector.broadcast %cst_83 : f32 to vector<1x8xf32>
    %90 = arith.addf %87, %89 : vector<1x8xf32>
    %91 = math.rsqrt %90 : vector<1x8xf32>
    %92 = arith.mulf %88, %91 : vector<1x8xf32>
    %c0_84 = arith.constant 0 : index
    %c0_85 = arith.constant 0 : index
    %93 = vector.load %arg6[%c0_84, %c0_85] : memref<1x8xf32, #tpu.memory_space<vmem>>, vector<1x8xf32>
    %94 = arith.mulf %68, %92 : vector<1x8xf32>
    %95 = arith.subf %93, %94 : vector<1x8xf32>
    %c0_86 = arith.constant 0 : index
    %c0_87 = arith.constant 0 : index
    %96 = vector.load %arg4[%c0_86, %c0_87] : memref<8x128xf32, #tpu.memory_space<vmem>>, vector<8x128xf32>
    %cst_88 = arith.constant dense<0.000000e+00> : vector<1x128xf32>
    %97 = tpu.matmul %92, %96, %cst_88 {dimension_numbers = #tpu.dot_dimension_numbers<[1], [0], [0], [1], [0, 0, 1, 1], [], []>} : vector<1x8xf32>, vector<8x128xf32>, vector<1x128xf32> -> vector<1x128xf32>
    %c0_89 = arith.constant 0 : index
    %c0_90 = arith.constant 0 : index
    %98 = vector.load %arg4[%c0_89, %c0_90] : memref<8x128xf32, #tpu.memory_space<vmem>>, vector<8x128xf32>
    %cst_91 = arith.constant dense<0.000000e+00> : vector<1x128xf32>
    %99 = tpu.matmul %95, %98, %cst_91 {dimension_numbers = #tpu.dot_dimension_numbers<[1], [0], [0], [1], [0, 0, 1, 1], [], []>} : vector<1x8xf32>, vector<8x128xf32>, vector<1x128xf32> -> vector<1x128xf32>
    %100 = vector.broadcast %97 : vector<1x128xf32> to vector<16x128xf32>
    %101 = arith.mulf %29, %100 : vector<16x128xf32>
    %102 = vector.broadcast %99 : vector<1x128xf32> to vector<16x128xf32>
    %103 = arith.addf %101, %102 : vector<16x128xf32>
    %cst_92 = arith.constant 0.000000e+00 : f32
    %104 = vector.broadcast %cst_92 : f32 to vector<16x128xf32>
    %105 = arith.maximumf %103, %104 : vector<16x128xf32>
    %c0_93 = arith.constant 0 : index
    %c0_94 = arith.constant 0 : index
    %c0_95 = arith.constant 0 : index
    %106 = vector.load %arg7[%c0_93, %c0_94, %c0_95] : memref<2x16x128xf32, #tpu.memory_space<vmem>>, vector<1x16x128xf32>
    %107 = vector.shape_cast %106 : vector<1x16x128xf32> to vector<16x128xf32>
    %108 = vector.shape_cast %105 : vector<16x128xf32> to vector<1x16x128xf32>
    tpu.vector_store %arg7[%c0_93, %c0_94, %c0_95], %108 {strides = array<i32>} : memref<2x16x128xf32, #tpu.memory_space<vmem>>, vector<1x16x128xf32>,
    %109 = vector.broadcast %97 : vector<1x128xf32> to vector<16x128xf32>
    %110 = arith.mulf %61, %109 : vector<16x128xf32>
    %111 = vector.broadcast %99 : vector<1x128xf32> to vector<16x128xf32>
    %112 = arith.addf %110, %111 : vector<16x128xf32>
    %cst_96 = arith.constant 0.000000e+00 : f32
    %113 = vector.broadcast %cst_96 : f32 to vector<16x128xf32>
    %114 = arith.maximumf %112, %113 : vector<16x128xf32>
    %c1_97 = arith.constant 1 : index
    %c0_98 = arith.constant 0 : index
    %c0_99 = arith.constant 0 : index
    %115 = vector.load %arg7[%c1_97, %c0_98, %c0_99] : memref<2x16x128xf32, #tpu.memory_space<vmem>>, vector<1x16x128xf32>
    %116 = vector.shape_cast %115 : vector<1x16x128xf32> to vector<16x128xf32>
    %117 = vector.shape_cast %114 : vector<16x128xf32> to vector<1x16x128xf32>
    tpu.vector_store %arg7[%c1_97, %c0_98, %c0_99], %117 {strides = array<i32>} : memref<2x16x128xf32, #tpu.memory_space<vmem>>, vector<1x16x128xf32>,
    return
  }
  func.func @transform_0(%arg0: i32) -> (i32, i32, i32) {
    %c0_i32 = arith.constant 0 : i32
    %c0_i32_0 = arith.constant 0 : i32
    %c0_i32_1 = arith.constant 0 : i32
    %c0_i32_2 = arith.constant 0 : i32
    return %c0_i32, %c0_i32_0, %c0_i32_1 : i32, i32, i32
  }
  func.func @transform_1(%arg0: i32) -> (i32, i32, i32) {
    %c0_i32 = arith.constant 0 : i32
    %c0_i32_0 = arith.constant 0 : i32
    %c0_i32_1 = arith.constant 0 : i32
    %c0_i32_2 = arith.constant 0 : i32
    return %c0_i32, %c0_i32_0, %c0_i32_1 : i32, i32, i32
  }
  func.func @transform_2(%arg0: i32) -> (i32, i32) {
    %c0_i32 = arith.constant 0 : i32
    %c0_i32_0 = arith.constant 0 : i32
    %c0_i32_1 = arith.constant 0 : i32
    return %c0_i32, %c0_i32_0 : i32, i32
  }
  func.func @transform_3(%arg0: i32) -> (i32, i32) {
    %c0_i32 = arith.constant 0 : i32
    %c0_i32_0 = arith.constant 0 : i32
    %c0_i32_1 = arith.constant 0 : i32
    return %c0_i32, %c0_i32_0 : i32, i32
  }
  func.func @transform_4(%arg0: i32) -> (i32, i32) {
    %c0_i32 = arith.constant 0 : i32
    %c0_i32_0 = arith.constant 0 : i32
    %c0_i32_1 = arith.constant 0 : i32
    return %c0_i32, %c0_i32_0 : i32, i32
  }
  func.func @transform_5(%arg0: i32) -> (i32, i32) {
    %c0_i32 = arith.constant 0 : i32
    %c0_i32_0 = arith.constant 0 : i32
    %c0_i32_1 = arith.constant 0 : i32
    return %c0_i32, %c0_i32_0 : i32, i32
  }
  func.func @transform_6(%arg0: i32) -> (i32, i32, i32) {
    %c0_i32 = arith.constant 0 : i32
    %c0_i32_0 = arith.constant 0 : i32
    %c0_i32_1 = arith.constant 0 : i32
    %c0_i32_2 = arith.constant 0 : i32
    return %c0_i32, %c0_i32_0, %c0_i32_1 : i32, i32, i32
  }
}

</mosaic_0001>

<llo_original>
// kernel: tpu_custom_call.1
$region0: #{tpu_custom_call.1}
  #allocation0 [shape = 'u32[]', space=smem, size = 0x4, offset = 0x4, fixed_abs, tag = 'smem constant byte address 0x4 - core index']
  #allocation1 [shape = 'u32[144,128]{1,0:T(1,128)}', space=vmem, size = 0x12000, scoped, tag = 'internal scratch']
  %s0 = inlined_call_operand.vmem [shape: f32[2,20,80], index: 0, kind: input, shape index: {}]
  %s1 = inlined_call_operand.hbm [shape: f32[5,80,128], index: 1, kind: input, shape index: {}]
  %s2 = inlined_call_operand.vmem [shape: f32[128,8], index: 2, kind: input, shape index: {}]
  %s3 = inlined_call_operand.vmem [shape: f32[8,128], index: 3, kind: input, shape index: {}]
  %s4 = inlined_call_operand.vmem [shape: f32[1,8], index: 4, kind: input, shape index: {}]
  %s5 = inlined_call_operand.vmem [shape: f32[1,8], index: 5, kind: input, shape index: {}]
  %s6 = inlined_call_operand.hbm [shape: f32[2,16,128], index: 6, kind: output, shape index: {}]
  %s7 = sld [smem:[#allocation0]]
  $region38: #{tpu_custom_call.1} parent=0
    _
  %s9 = ssub.s32 1, %s7
  %s10 = scalar_select 0, %s9, %s7
  $region1: #{tpu_custom_call.1} parent=0
    #allocation2 [shape = 'u8[204800]{0}', space=vmem, size = 0x32000, scoped, tag = 'input window, operand 1, single buffered']
    #allocation3 [shape = 's32[1]{0}', space=sflag, size = 0x4, scoped, tag = 'scoped memory for tpu_custom_call.1']
    #allocation4 [shape = 's32[1]{0}', space=sflag, size = 0x4, scoped, tag = 'scoped memory for tpu_custom_call.1']
    #allocation5 [shape = 'u8[16384]{0}', space=vmem, size = 0x4000, scoped, tag = 'output window, operand 0, single buffered']
    %11 = vsyncpa [#allocation3], 0
    %12 = vsyncpa [#allocation4], 0
    // Predicated region
    $region2: #{tpu_custom_call.1} parent=1 // pred_check
      _
    $region3: #{tpu_custom_call.1} parent=1 // pred_check_branch
      %14 = sbr.rel (0) target = $region5
    $region4: #{tpu_custom_call.1} parent=1 // pred_region
      _
    $region5: #{tpu_custom_call.1} parent=1 // pred_fallthru
      _
    // Predicated region
    $region6: #{tpu_custom_call.1} parent=1 // pred_check
      _
    $region7: #{tpu_custom_call.1} parent=1 // pred_check_branch
      %16 = sbr.rel (0) target = $region9
    $region8: #{tpu_custom_call.1} parent=1 // pred_region
      %s18 = ssub.s32 6400, 6400
      %19 = vsyncadd [#allocation3], %s18
      %s20 = sshll.u32 [#allocation2], 4
      %s21 = int_to_ptr.vmem [resolvable:$true] %s20
      %26 = dma.hbm_to_vmem [thread:$0]  %s1, 6400, %s21, [#allocation3], 128, 128, 8
    $region9: #{tpu_custom_call.1} parent=1 // pred_fallthru
      _
    // Predicated region
    $region10: #{tpu_custom_call.1} parent=1 // pred_check
      _
    $region11: #{tpu_custom_call.1} parent=1 // pred_check_branch
      %28 = sbr.rel (0) target = $region13
    $region12: #{tpu_custom_call.1} parent=1 // pred_region
      _
    $region13: #{tpu_custom_call.1} parent=1 // pred_fallthru
      _
    // Predicated region
    $region14: #{tpu_custom_call.1} parent=1 // pred_check
      _
    $region15: #{tpu_custom_call.1} parent=1 // pred_check_branch
      %30 = sbr.rel (0) target = $region17
    $region16: #{tpu_custom_call.1} parent=1 // pred_region
      _
    $region17: #{tpu_custom_call.1} parent=1 // pred_fallthru
      _
    // Predicated region
    $region18: #{tpu_custom_call.1} parent=1 // pred_check
      _
    $region19: #{tpu_custom_call.1} parent=1 // pred_check_branch
      %32 = sbr.rel (0) target = $region21
    $region20: #{tpu_custom_call.1} parent=1 // pred_region
      _
    $region21: #{tpu_custom_call.1} parent=1 // pred_fallthru
      _
    // Predicated region
    $region22: #{tpu_custom_call.1} parent=1 // pred_check
      _
    $region23: #{tpu_custom_call.1} parent=1 // pred_check_branch
      %34 = sbr.rel (0) target = $region25
    $region24: #{tpu_custom_call.1} parent=1 // pred_region
      _
    $region25: #{tpu_custom_call.1} parent=1 // pred_fallthru
      _
    // Predicated region
    $region26: #{tpu_custom_call.1} parent=1 // pred_check
      _
    $region27: #{tpu_custom_call.1} parent=1 // pred_check_branch
      %36 = sbr.rel (0) target = $region29
    $region28: #{tpu_custom_call.1} parent=1 // pred_region
      %37 = dma.done [#allocation3], 6400
    $region29: #{tpu_custom_call.1} parent=1 // pred_fallthru
      _
    %v38 = vld [vmem:[%s0] sm:$0xff]
    %v39 = vld [vmem:[%s0 + $0x8] sm:$0xff]
    %v40 = vld [vmem:[#allocation2] sm:$0xff]
    %v41 = vld [vmem:[#allocation2 + $0x8] sm:$0xff]
    %v42 = vld [vmem:[#allocation2 + $0x10] sm:$0xff]
    %v43 = vld [vmem:[#allocation2 + $0x18] sm:$0xff]
    %v44 = vld [vmem:[#allocation2 + $0x20] sm:$0xff]
    %v45 = vld [vmem:[#allocation2 + $0x28] sm:$0xff]
    %v46 = vld [vmem:[#allocation2 + $0x30] sm:$0xff]
    %v47 = vld [vmem:[#allocation2 + $0x38] sm:$0xff]
    %v48 = vld [vmem:[#allocation2 + $0x40] sm:$0xff]
    %v49 = vld [vmem:[#allocation2 + $0x48] sm:$0xff]
    %v50 = vld [vmem:[%s0 + $0x1] sm:$0xff]
    %v51 = vld [vmem:[%s0 + $0x9] sm:$0xff]
    %s52 = scalar_lea.vmem [#allocation2], 80
    %v53 = vld [vmem:[%s52] sm:$0xff]
    %v54 = vld [vmem:[%s52 + $0x8] sm:$0xff]
    %v55 = vld [vmem:[%s52 + $0x10] sm:$0xff]
    %v56 = vld [vmem:[%s52 + $0x18] sm:$0xff]
    %v57 = vld [vmem:[%s52 + $0x20] sm:$0xff]
    %v58 = vld [vmem:[%s52 + $0x28] sm:$0xff]
    %v59 = vld [vmem:[%s52 + $0x30] sm:$0xff]
    %v60 = vld [vmem:[%s52 + $0x38] sm:$0xff]
    %v61 = vld [vmem:[%s52 + $0x40] sm:$0xff]
    %v62 = vld [vmem:[%s52 + $0x48] sm:$0xff]
    %vm63 = vcmask 654336
    %v65 = vsel %vm63, %v50, 0
    %v68 = vsel %vm63, %v51, 0
    %70 = vmatprep.subr.mxu0 0.0
    %71 = vmatpush1.msra.mxu0 %v53
    %72 = vmatprep.subr.mxu0 0.0
    %73 = vmatpush1.msra.mxu0 %v54
    %74 = vmatprep.subr.mxu0 0.0
    %75 = vmatpush1.msra.mxu0 %v55
    %76 = vmatprep.subr.mxu0 0.0
    %77 = vmatpush1.msra.mxu0 %v56
    %78 = vmatprep.subr.mxu0 0.0
    %79 = vmatpush1.msra.mxu0 %v57
    %80 = vmatprep.subr.mxu0 0.0
    %81 = vmatpush1.msra.mxu0 %v58
    %82 = vmatprep.subr.mxu0 0.0
    %83 = vmatpush1.msra.mxu0 %v59
    %84 = vmatprep.subr.mxu0 0.0
    %85 = vmatpush1.msra.mxu0 %v60
    %86 = vmatprep.subr.mxu0 0.0
    %87 = vmatpush1.msra.mxu0 %v61
    %88 = vmatprep.subr.mxu0 0.0
    %89 = vmatpush1.msra.mxu0 %v62
    %90 = vmatprep.subr.mxu0 0.0
    %91 = vmatpush1.msra.mxu0 0.0
    %92 = vmatprep.subr.mxu0 0.0
    %93 = vmatpush1.msra.mxu0 0.0
    %94 = vmatprep.subr.mxu0 0.0
    %95 = vmatpush1.msra.mxu0 0.0
    %96 = vmatprep.subr.mxu0 0.0
    %97 = vmatpush1.msra.mxu0 0.0
    %98 = vmatprep.subr.mxu0 0.0
    %99 = vmatpush1.msra.mxu0 0.0
    %100 = vmatprep.subr.mxu0 0.0
    %101 = vmatpush1.msra.mxu0 0.0
    %102 = vmatprep.subr.mxu0 0.0
    %103 = vmatpush1.msra.mxu0 0.0
    %104 = vmatprep.subr.mxu0 0.0
    %105 = vmatpush1.msra.mxu0 0.0
    %106 = vmatprep.subr.mxu0 0.0
    %107 = vmatpush1.msra.mxu0 0.0
    %108 = vmatprep.subr.mxu0 0.0
    %109 = vmatpush1.msra.mxu0 0.0
    %110 = vmatprep.subr.mxu0 0.0
    %111 = vmatpush1.msra.mxu0 0.0
    %112 = vmatprep.subr.mxu0 0.0
    %113 = vmatpush1.msra.mxu0 0.0
    %114 = vmatprep.subr.mxu0 0.0
    %115 = vmatpush1.msra.mxu0 0.0
    %116 = vmatprep.subr.mxu0 0.0
    %117 = vmatpush1.msra.mxu0 0.0
    %118 = vmatprep.subr.mxu0 0.0
    %119 = vmatpush1.msra.mxu0 0.0
    %120 = vmatprep.subr.mxu0 0.0
    %121 = vmatpush1.msra.mxu0 0.0
    %122 = vmatprep.subr.mxu0 0.0
    %123 = vmatpush1.msra.mxu0 0.0
    %124 = vmatprep.subr.mxu0 0.0
    %125 = vmatpush1.msra.mxu0 0.0
    %126 = vmatprep.subr.mxu0 0.0
    %127 = vmatpush1.msra.mxu0 0.0
    %128 = vmatprep.subr.mxu0 0.0
    %129 = vmatpush1.msra.mxu0 0.0
    %130 = vmatprep.subr.mxu0 0.0
    %131 = vmatpush1.msra.mxu0 0.0
    %132 = vmatprep.subr.mxu0 0.0
    %133 = vmatpush1.msra.mxu0 0.0
    %134 = vmatprep.mubr.f32.mxu0 0.0
    %135 = vmatmul.mubr.f32.gmra.mrb[0].mxu0 %v65
    %v136 = vpop.f32.mrb[0].mxu0
    %v137 = vadd.f32 0.0, %v136
    %v138 = vpop.f32.mrb[0].mxu0
    %139 = vmatprep.mubr.f32.mxu0 0.0
    %140 = vmatmul.mubr.f32.gmra.mrb[0].mxu0 %v68
    %v141 = vpop.f32.mrb[0].mxu0
    %v142 = vadd.f32 0.0, %v141
    %v143 = vpop.f32.mrb[0].mxu0
    %144 = vdwg.mxu0
    %v146 = vsel %vm63, %v38, 0
    %v149 = vsel %vm63, %v39, 0
    %151 = vmatprep.subr.mxu0 0.0
    %152 = vmatpush1.msra.mxu0 %v40
    %153 = vmatprep.subr.mxu0 0.0
    %154 = vmatpush1.msra.mxu0 %v41
    %155 = vmatprep.subr.mxu0 0.0
    %156 = vmatpush1.msra.mxu0 %v42
    %157 = vmatprep.subr.mxu0 0.0
    %158 = vmatpush1.msra.mxu0 %v43
    %159 = vmatprep.subr.mxu0 0.0
    %160 = vmatpush1.msra.mxu0 %v44
    %161 = vmatprep.subr.mxu0 0.0
    %162 = vmatpush1.msra.mxu0 %v45
    %163 = vmatprep.subr.mxu0 0.0
    %164 = vmatpush1.msra.mxu0 %v46
    %165 = vmatprep.subr.mxu0 0.0
    %166 = vmatpush1.msra.mxu0 %v47
    %167 = vmatprep.subr.mxu0 0.0
    %168 = vmatpush1.msra.mxu0 %v48
    %169 = vmatprep.subr.mxu0 0.0
    %170 = vmatpush1.msra.mxu0 %v49
    %171 = vmatprep.subr.mxu0 0.0
    %172 = vmatpush1.msra.mxu0 0.0
    %173 = vmatprep.subr.mxu0 0.0
    %174 = vmatpush1.msra.mxu0 0.0
    %175 = vmatprep.subr.mxu0 0.0
    %176 = vmatpush1.msra.mxu0 0.0
    %177 = vmatprep.subr.mxu0 0.0
    %178 = vmatpush1.msra.mxu0 0.0
    %179 = vmatprep.subr.mxu0 0.0
    %180 = vmatpush1.msra.mxu0 0.0
    %181 = vmatprep.subr.mxu0 0.0
    %182 = vmatpush1.msra.mxu0 0.0
    %183 = vmatprep.subr.mxu0 0.0
    %184 = vmatpush1.msra.mxu0 0.0
    %185 = vmatprep.subr.mxu0 0.0
    %186 = vmatpush1.msra.mxu0 0.0
    %187 = vmatprep.subr.mxu0 0.0
    %188 = vmatpush1.msra.mxu0 0.0
    %189 = vmatprep.subr.mxu0 0.0
    %190 = vmatpush1.msra.mxu0 0.0
    %191 = vmatprep.subr.mxu0 0.0
    %192 = vmatpush1.msra.mxu0 0.0
    %193 = vmatprep.subr.mxu0 0.0
    %194 = vmatpush1.msra.mxu0 0.0
    %195 = vmatprep.subr.mxu0 0.0
    %196 = vmatpush1.msra.mxu0 0.0
    %197 = vmatprep.subr.mxu0 0.0
    %198 = vmatpush1.msra.mxu0 0.0
    %199 = vmatprep.subr.mxu0 0.0
    %200 = vmatpush1.msra.mxu0 0.0
    %201 = vmatprep.subr.mxu0 0.0
    %202 = vmatpush1.msra.mxu0 0.0
    %203 = vmatprep.subr.mxu0 0.0
    %204 = vmatpush1.msra.mxu0 0.0
    %205 = vmatprep.subr.mxu0 0.0
    %206 = vmatpush1.msra.mxu0 0.0
    %207 = vmatprep.subr.mxu0 0.0
    %208 = vmatpush1.msra.mxu0 0.0
    %209 = vmatprep.subr.mxu0 0.0
    %210 = vmatpush1.msra.mxu0 0.0
    %211 = vmatprep.subr.mxu0 0.0
    %212 = vmatpush1.msra.mxu0 0.0
    %213 = vmatprep.subr.mxu0 0.0
    %214 = vmatpush1.msra.mxu0 0.0
    %215 = vmatprep.mubr.f32.mxu0 0.0
    %216 = vmatmul.mubr.f32.gmra.mrb[0].mxu0 %v146
    %v217 = vpop.f32.mrb[0].mxu0
    %v218 = vadd.f32 %v137, %v217
    %v219 = vpop.f32.mrb[0].mxu0
    %220 = vmatprep.mubr.f32.mxu0 0.0
    %221 = vmatmul.mubr.f32.gmra.mrb[0].mxu0 %v149
    %v222 = vpop.f32.mrb[0].mxu0
    %v223 = vadd.f32 %v142, %v222
    %v224 = vpop.f32.mrb[0].mxu0
    %225 = vdwg.mxu0
    %v226 = vld [vmem:[%s0 + $0x2] sm:$0xff]
    %v227 = vld [vmem:[%s0 + $0xa] sm:$0xff]
    %s228 = scalar_lea.vmem [#allocation2], 160
    %v229 = vld [vmem:[%s228] sm:$0xff]
    %v230 = vld [vmem:[%s228 + $0x8] sm:$0xff]
    %v231 = vld [vmem:[%s228 + $0x10] sm:$0xff]
    %v232 = vld [vmem:[%s228 + $0x18] sm:$0xff]
    %v233 = vld [vmem:[%s228 + $0x20] sm:$0xff]
    %v234 = vld [vmem:[%s228 + $0x28] sm:$0xff]
    %v235 = vld [vmem:[%s228 + $0x30] sm:$0xff]
    %v236 = vld [vmem:[%s228 + $0x38] sm:$0xff]
    %v237 = vld [vmem:[%s228 + $0x40] sm:$0xff]
    %v238 = vld [vmem:[%s228 + $0x48] sm:$0xff]
    %v240 = vsel %vm63, %v226, 0
    %v243 = vsel %vm63, %v227, 0
    %245 = vmatprep.subr.mxu0 0.0
    %246 = vmatpush1.msra.mxu0 %v229
    %247 = vmatprep.subr.mxu0 0.0
    %248 = vmatpush1.msra.mxu0 %v230
    %249 = vmatprep.subr.mxu0 0.0
    %250 = vmatpush1.msra.mxu0 %v231
    %251 = vmatprep.subr.mxu0 0.0
    %252 = vmatpush1.msra.mxu0 %v232
    %253 = vmatprep.subr.mxu0 0.0
    %254 = vmatpush1.msra.mxu0 %v233
    %255 = vmatprep.subr.mxu0 0.0
    %256 = vmatpush1.msra.mxu0 %v234
    %257 = vmatprep.subr.mxu0 0.0
    %258 = vmatpush1.msra.mxu0 %v235
    %259 = vmatprep.subr.mxu0 0.0
    %260 = vmatpush1.msra.mxu0 %v236
    %261 = vmatprep.subr.mxu0 0.0
    %262 = vmatpush1.msra.mxu0 %v237
    %263 = vmatprep.subr.mxu0 0.0
    %264 = vmatpush1.msra.mxu0 %v238
    %265 = vmatprep.subr.mxu0 0.0
    %266 = vmatpush1.msra.mxu0 0.0
    %267 = vmatprep.subr.mxu0 0.0
    %268 = vmatpush1.msra.mxu0 0.0
    %269 = vmatprep.subr.mxu0 0.0
    %270 = vmatpush1.msra.mxu0 0.0
    %271 = vmatprep.subr.mxu0 0.0
    %272 = vmatpush1.msra.mxu0 0.0
    %273 = vmatprep.subr.mxu0 0.0
    %274 = vmatpush1.msra.mxu0 0.0
    %275 = vmatprep.subr.mxu0 0.0
    %276 = vmatpush1.msra.mxu0 0.0
    %277 = vmatprep.subr.mxu0 0.0
    %278 = vmatpush1.msra.mxu0 0.0
    %279 = vmatprep.subr.mxu0 0.0
    %280 = vmatpush1.msra.mxu0 0.0
    %281 = vmatprep.subr.mxu0 0.0
    %282 = vmatpush1.msra.mxu0 0.0
    %283 = vmatprep.subr.mxu0 0.0
    %284 = vmatpush1.msra.mxu0 0.0
    %285 = vmatprep.subr.mxu0 0.0
    %286 = vmatpush1.msra.mxu0 0.0
    %287 = vmatprep.subr.mxu0 0.0
    %288 = vmatpush1.msra.mxu0 0.0
    %289 = vmatprep.subr.mxu0 0.0
    %290 = vmatpush1.msra.mxu0 0.0
    %291 = vmatprep.subr.mxu0 0.0
    %292 = vmatpush1.msra.mxu0 0.0
    %293 = vmatprep.subr.mxu0 0.0
    %294 = vmatpush1.msra.mxu0 0.0
    %295 = vmatprep.subr.mxu0 0.0
    %296 = vmatpush1.msra.mxu0 0.0
    %297 = vmatprep.subr.mxu0 0.0
    %298 = vmatpush1.msra.mxu0 0.0
    %299 = vmatprep.subr.mxu0 0.0
    %300 = vmatpush1.msra.mxu0 0.0
    %301 = vmatprep.subr.mxu0 0.0
    %302 = vmatpush1.msra.mxu0 0.0
    %303 = vmatprep.subr.mxu0 0.0
    %304 = vmatpush1.msra.mxu0 0.0
    %305 = vmatprep.subr.mxu0 0.0
    %306 = vmatpush1.msra.mxu0 0.0
    %307 = vmatprep.subr.mxu0 0.0
    %308 = vmatpush1.msra.mxu0 0.0
    %309 = vmatprep.mubr.f32.mxu0 0.0
    %310 = vmatmul.mubr.f32.gmra.mrb[0].mxu0 %v240
    %v311 = vpop.f32.mrb[0].mxu0
    %v312 = vadd.f32 0.0, %v311
    %v313 = vpop.f32.mrb[0].mxu0
    %314 = vmatprep.mubr.f32.mxu0 0.0
    %315 = vmatmul.mubr.f32.gmra.mrb[0].mxu0 %v243
    %v316 = vpop.f32.mrb[0].mxu0
    %v317 = vadd.f32 0.0, %v316
    %v318 = vpop.f32.mrb[0].mxu0
    %319 = vdwg.mxu0
    %v320 = vadd.f32 %v218, %v312
    %v321 = vadd.f32 %v223, %v317
    %v322 = vld [vmem:[%s0 + $0x3] sm:$0xff]
    %v323 = vld [vmem:[%s0 + $0xb] sm:$0xff]
    %s324 = scalar_lea.vmem [#allocation2], 240
    %v325 = vld [vmem:[%s324] sm:$0xff]
    %v326 = vld [vmem:[%s324 + $0x8] sm:$0xff]
    %v327 = vld [vmem:[%s324 + $0x10] sm:$0xff]
    %v328 = vld [vmem:[%s324 + $0x18] sm:$0xff]
    %v329 = vld [vmem:[%s324 + $0x20] sm:$0xff]
    %v330 = vld [vmem:[%s324 + $0x28] sm:$0xff]
    %v331 = vld [vmem:[%s324 + $0x30] sm:$0xff]
    %v332 = vld [vmem:[%s324 + $0x38] sm:$0xff]
    %v333 = vld [vmem:[%s324 + $0x40] sm:$0xff]
    %v334 = vld [vmem:[%s324 + $0x48] sm:$0xff]
    %v336 = vsel %vm63, %v322, 0
    %v339 = vsel %vm63, %v323, 0
    %341 = vmatprep.subr.mxu0 0.0
    %342 = vmatpush1.msra.mxu0 %v325
    %343 = vmatprep.subr.mxu0 0.0
    %344 = vmatpush1.msra.mxu0 %v326
    %345 = vmatprep.subr.mxu0 0.0
    %346 = vmatpush1.msra.mxu0 %v327
    %347 = vmatprep.subr.mxu0 0.0
    %348 = vmatpush1.msra.mxu0 %v328
    %349 = vmatprep.subr.mxu0 0.0
    %350 = vmatpush1.msra.mxu0 %v329
    %351 = vmatprep.subr.mxu0 0.0
    %352 = vmatpush1.msra.mxu0 %v330
    %353 = vmatprep.subr.mxu0 0.0
    %354 = vmatpush1.msra.mxu0 %v331
    %355 = vmatprep.subr.mxu0 0.0
    %356 = vmatpush1.msra.mxu0 %v332
    %357 = vmatprep.subr.mxu0 0.0
    %358 = vmatpush1.msra.mxu0 %v333
    %359 = vmatprep.subr.mxu0 0.0
    %360 = vmatpush1.msra.mxu0 %v334
    %361 = vmatprep.subr.mxu0 0.0
    %362 = vmatpush1.msra.mxu0 0.0
    %363 = vmatprep.subr.mxu0 0.0
    %364 = vmatpush1.msra.mxu0 0.0
    %365 = vmatprep.subr.mxu0 0.0
    %366 = vmatpush1.msra.mxu0 0.0
    %367 = vmatprep.subr.mxu0 0.0
    %368 = vmatpush1.msra.mxu0 0.0
    %369 = vmatprep.subr.mxu0 0.0
    %370 = vmatpush1.msra.mxu0 0.0
    %371 = vmatprep.subr.mxu0 0.0
    %372 = vmatpush1.msra.mxu0 0.0
    %373 = vmatprep.subr.mxu0 0.0
    %374 = vmatpush1.msra.mxu0 0.0
    %375 = vmatprep.subr.mxu0 0.0
    %376 = vmatpush1.msra.mxu0 0.0
    %377 = vmatprep.subr.mxu0 0.0
    %378 = vmatpush1.msra.mxu0 0.0
    %379 = vmatprep.subr.mxu0 0.0
    %380 = vmatpush1.msra.mxu0 0.0
    %381 = vmatprep.subr.mxu0 0.0
    %382 = vmatpush1.msra.mxu0 0.0
    %383 = vmatprep.subr.mxu0 0.0
    %384 = vmatpush1.msra.mxu0 0.0
    %385 = vmatprep.subr.mxu0 0.0
    %386 = vmatpush1.msra.mxu0 0.0
    %387 = vmatprep.subr.mxu0 0.0
    %388 = vmatpush1.msra.mxu0 0.0
    %389 = vmatprep.subr.mxu0 0.0
    %390 = vmatpush1.msra.mxu0 0.0
    %391 = vmatprep.subr.mxu0 0.0
    %392 = vmatpush1.msra.mxu0 0.0
    %393 = vmatprep.subr.mxu0 0.0
    %394 = vmatpush1.msra.mxu0 0.0
    %395 = vmatprep.subr.mxu0 0.0
    %396 = vmatpush1.msra.mxu0 0.0
    %397 = vmatprep.subr.mxu0 0.0
    %398 = vmatpush1.msra.mxu0 0.0
    %399 = vmatprep.subr.mxu0 0.0
    %400 = vmatpush1.msra.mxu0 0.0
    %401 = vmatprep.subr.mxu0 0.0
    %402 = vmatpush1.msra.mxu0 0.0
    %403 = vmatprep.subr.mxu0 0.0
    %404 = vmatpush1.msra.mxu0 0.0
    %405 = vmatprep.mubr.f32.mxu0 0.0
    %406 = vmatmul.mubr.f32.gmra.mrb[0].mxu0 %v336
    %v407 = vpop.f32.mrb[0].mxu0
    %v408 = vadd.f32 0.0, %v407
    %v409 = vpop.f32.mrb[0].mxu0
    %410 = vmatprep.mubr.f32.mxu0 0.0
    %411 = vmatmul.mubr.f32.gmra.mrb[0].mxu0 %v339
    %v412 = vpop.f32.mrb[0].mxu0
    %v413 = vadd.f32 0.0, %v412
    %v414 = vpop.f32.mrb[0].mxu0
    %415 = vdwg.mxu0
    %v416 = vadd.f32 %v320, %v408
    %v417 = vadd.f32 %v321, %v413
    %v418 = vld [vmem:[%s0 + $0x4] sm:$0xff]
    %v419 = vld [vmem:[%s0 + $0xc] sm:$0xff]
    %s420 = scalar_lea.vmem [#allocation2], 320
    %v421 = vld [vmem:[%s420] sm:$0xff]
    %v422 = vld [vmem:[%s420 + $0x8] sm:$0xff]
    %v423 = vld [vmem:[%s420 + $0x10] sm:$0xff]
    %v424 = vld [vmem:[%s420 + $0x18] sm:$0xff]
    %v425 = vld [vmem:[%s420 + $0x20] sm:$0xff]
    %v426 = vld [vmem:[%s420 + $0x28] sm:$0xff]
    %v427 = vld [vmem:[%s420 + $0x30] sm:$0xff]
    %v428 = vld [vmem:[%s420 + $0x38] sm:$0xff]
    %v429 = vld [vmem:[%s420 + $0x40] sm:$0xff]
    %v430 = vld [vmem:[%s420 + $0x48] sm:$0xff]
    %v432 = vsel %vm63, %v418, 0
    %v435 = vsel %vm63, %v419, 0
    %437 = vmatprep.subr.mxu0 0.0
    %438 = vmatpush1.msra.mxu0 %v421
    %439 = vmatprep.subr.mxu0 0.0
    %440 = vmatpush1.msra.mxu0 %v422
    %441 = vmatprep.subr.mxu0 0.0
    %442 = vmatpush1.msra.mxu0 %v423
    %443 = vmatprep.subr.mxu0 0.0
    %444 = vmatpush1.msra.mxu0 %v424
    %445 = vmatprep.subr.mxu0 0.0
    %446 = vmatpush1.msra.mxu0 %v425
    %447 = vmatprep.subr.mxu0 0.0
    %448 = vmatpush1.msra.mxu0 %v426
    %449 = vmatprep.subr.mxu0 0.0
    %450 = vmatpush1.msra.mxu0 %v427
    %451 = vmatprep.subr.mxu0 0.0
    %452 = vmatpush1.msra.mxu0 %v428
    %453 = vmatprep.subr.mxu0 0.0
    %454 = vmatpush1.msra.mxu0 %v429
    %455 = vmatprep.subr.mxu0 0.0
    %456 = vmatpush1.msra.mxu0 %v430
    %457 = vmatprep.subr.mxu0 0.0
    %458 = vmatpush1.msra.mxu0 0.0
    %459 = vmatprep.subr.mxu0 0.0
    %460 = vmatpush1.msra.mxu0 0.0
    %461 = vmatprep.subr.mxu0 0.0
    %462 = vmatpush1.msra.mxu0 0.0
    %463 = vmatprep.subr.mxu0 0.0
    %464 = vmatpush1.msra.mxu0 0.0
    %465 = vmatprep.subr.mxu0 0.0
    %466 = vmatpush1.msra.mxu0 0.0
    %467 = vmatprep.subr.mxu0 0.0
    %468 = vmatpush1.msra.mxu0 0.0
    %469 = vmatprep.subr.mxu0 0.0
    %470 = vmatpush1.msra.mxu0 0.0
    %471 = vmatprep.subr.mxu0 0.0
    %472 = vmatpush1.msra.mxu0 0.0
    %473 = vmatprep.subr.mxu0 0.0
    %474 = vmatpush1.msra.mxu0 0.0
    %475 = vmatprep.subr.mxu0 0.0
    %476 = vmatpush1.msra.mxu0 0.0
    %477 = vmatprep.subr.mxu0 0.0
    %478 = vmatpush1.msra.mxu0 0.0
    %479 = vmatprep.subr.mxu0 0.0
    %480 = vmatpush1.msra.mxu0 0.0
    %481 = vmatprep.subr.mxu0 0.0
    %482 = vmatpush1.msra.mxu0 0.0
    %483 = vmatprep.subr.mxu0 0.0
    %484 = vmatpush1.msra.mxu0 0.0
    %485 = vmatprep.subr.mxu0 0.0
    %486 = vmatpush1.msra.mxu0 0.0
    %487 = vmatprep.subr.mxu0 0.0
    %488 = vmatpush1.msra.mxu0 0.0
    %489 = vmatprep.subr.mxu0 0.0
    %490 = vmatpush1.msra.mxu0 0.0
    %491 = vmatprep.subr.mxu0 0.0
    %492 = vmatpush1.msra.mxu0 0.0
    %493 = vmatprep.subr.mxu0 0.0
    %494 = vmatpush1.msra.mxu0 0.0
    %495 = vmatprep.subr.mxu0 0.0
    %496 = vmatpush1.msra.mxu0 0.0
    %497 = vmatprep.subr.mxu0 0.0
    %498 = vmatpush1.msra.mxu0 0.0
    %499 = vmatprep.subr.mxu0 0.0
    %500 = vmatpush1.msra.mxu0 0.0
    %501 = vmatprep.mubr.f32.mxu0 0.0
    %502 = vmatmul.mubr.f32.gmra.mrb[0].mxu0 %v432
    %v503 = vpop.f32.mrb[0].mxu0
    %v504 = vadd.f32 0.0, %v503
    %v505 = vpop.f32.mrb[0].mxu0
    %506 = vmatprep.mubr.f32.mxu0 0.0
    %507 = vmatmul.mubr.f32.gmra.mrb[0].mxu0 %v435
    %v508 = vpop.f32.mrb[0].mxu0
    %v509 = vadd.f32 0.0, %v508
    %v510 = vpop.f32.mrb[0].mxu0
    %511 = vdwg.mxu0
    %v512 = vadd.f32 %v416, %v504
    %v513 = vadd.f32 %v417, %v509
    %v514 = vadd.f32 %v512, %v513
    %v515 = vrot.slane %v514, 4
    %v516 = vadd.f32 %v514, %v515
    %v517 = vrot.slane %v516, 2
    %v518 = vadd.f32 %v516, %v517
    %v519 = vrot.slane %v518, 1
    %v520 = vadd.f32 %v518, %v519
    %v521 = vadd.f32 %v520, 0.0
    %s522 = scalar_lea.vmem %s0, 24
    %v523 = vld [vmem:[%s522] sm:$0xff]
    %v524 = vld [vmem:[%s522 + $0x8] sm:$0xff]
    %v525 = vld [vmem:[%s522 + $0x1] sm:$0xff]
    %v526 = vld [vmem:[%s522 + $0x9] sm:$0xff]
    %v528 = vsel %vm63, %v525, 0
    %v531 = vsel %vm63, %v526, 0
    %533 = vmatprep.subr.mxu0 0.0
    %534 = vmatpush1.msra.mxu0 %v53
    %535 = vmatprep.subr.mxu0 0.0
    %536 = vmatpush1.msra.mxu0 %v54
    %537 = vmatprep.subr.mxu0 0.0
    %538 = vmatpush1.msra.mxu0 %v55
    %539 = vmatprep.subr.mxu0 0.0
    %540 = vmatpush1.msra.mxu0 %v56
    %541 = vmatprep.subr.mxu0 0.0
    %542 = vmatpush1.msra.mxu0 %v57
    %543 = vmatprep.subr.mxu0 0.0
    %544 = vmatpush1.msra.mxu0 %v58
    %545 = vmatprep.subr.mxu0 0.0
    %546 = vmatpush1.msra.mxu0 %v59
    %547 = vmatprep.subr.mxu0 0.0
    %548 = vmatpush1.msra.mxu0 %v60
    %549 = vmatprep.subr.mxu0 0.0
    %550 = vmatpush1.msra.mxu0 %v61
    %551 = vmatprep.subr.mxu0 0.0
    %552 = vmatpush1.msra.mxu0 %v62
    %553 = vmatprep.subr.mxu0 0.0
    %554 = vmatpush1.msra.mxu0 0.0
    %555 = vmatprep.subr.mxu0 0.0
    %556 = vmatpush1.msra.mxu0 0.0
    %557 = vmatprep.subr.mxu0 0.0
    %558 = vmatpush1.msra.mxu0 0.0
    %559 = vmatprep.subr.mxu0 0.0
    %560 = vmatpush1.msra.mxu0 0.0
    %561 = vmatprep.subr.mxu0 0.0
    %562 = vmatpush1.msra.mxu0 0.0
    %563 = vmatprep.subr.mxu0 0.0
    %564 = vmatpush1.msra.mxu0 0.0
    %565 = vmatprep.subr.mxu0 0.0
    %566 = vmatpush1.msra.mxu0 0.0
    %567 = vmatprep.subr.mxu0 0.0
    %568 = vmatpush1.msra.mxu0 0.0
    %569 = vmatprep.subr.mxu0 0.0
    %570 = vmatpush1.msra.mxu0 0.0
    %571 = vmatprep.subr.mxu0 0.0
    %572 = vmatpush1.msra.mxu0 0.0
    %573 = vmatprep.subr.mxu0 0.0
    %574 = vmatpush1.msra.mxu0 0.0
    %575 = vmatprep.subr.mxu0 0.0
    %576 = vmatpush1.msra.mxu0 0.0
    %577 = vmatprep.subr.mxu0 0.0
    %578 = vmatpush1.msra.mxu0 0.0
    %579 = vmatprep.subr.mxu0 0.0
    %580 = vmatpush1.msra.mxu0 0.0
    %581 = vmatprep.subr.mxu0 0.0
    %582 = vmatpush1.msra.mxu0 0.0
    %583 = vmatprep.subr.mxu0 0.0
    %584 = vmatpush1.msra.mxu0 0.0
    %585 = vmatprep.subr.mxu0 0.0
    %586 = vmatpush1.msra.mxu0 0.0
    %587 = vmatprep.subr.mxu0 0.0
    %588 = vmatpush1.msra.mxu0 0.0
    %589 = vmatprep.subr.mxu0 0.0
    %590 = vmatpush1.msra.mxu0 0.0
    %591 = vmatprep.subr.mxu0 0.0
    %592 = vmatpush1.msra.mxu0 0.0
    %593 = vmatprep.subr.mxu0 0.0
    %594 = vmatpush1.msra.mxu0 0.0
    %595 = vmatprep.subr.mxu0 0.0
    %596 = vmatpush1.msra.mxu0 0.0
    %597 = vmatprep.mubr.f32.mxu0 0.0
    %598 = vmatmul.mubr.f32.gmra.mrb[0].mxu0 %v528
    %v599 = vpop.f32.mrb[0].mxu0
    %v600 = vadd.f32 0.0, %v599
    %v601 = vpop.f32.mrb[0].mxu0
    %602 = vmatprep.mubr.f32.mxu0 0.0
    %603 = vmatmul.mubr.f32.gmra.mrb[0].mxu0 %v531
    %v604 = vpop.f32.mrb[0].mxu0
    %v605 = vadd.f32 0.0, %v604
    %v606 = vpop.f32.mrb[0].mxu0
    %607 = vdwg.mxu0
    %v609 = vsel %vm63, %v523, 0
    %v612 = vsel %vm63, %v524, 0
    %614 = vmatprep.subr.mxu0 0.0
    %615 = vmatpush1.msra.mxu0 %v40
    %616 = vmatprep.subr.mxu0 0.0
    %617 = vmatpush1.msra.mxu0 %v41
    %618 = vmatprep.subr.mxu0 0.0
    %619 = vmatpush1.msra.mxu0 %v42
    %620 = vmatprep.subr.mxu0 0.0
    %621 = vmatpush1.msra.mxu0 %v43
    %622 = vmatprep.subr.mxu0 0.0
    %623 = vmatpush1.msra.mxu0 %v44
    %624 = vmatprep.subr.mxu0 0.0
    %625 = vmatpush1.msra.mxu0 %v45
    %626 = vmatprep.subr.mxu0 0.0
    %627 = vmatpush1.msra.mxu0 %v46
    %628 = vmatprep.subr.mxu0 0.0
    %629 = vmatpush1.msra.mxu0 %v47
    %630 = vmatprep.subr.mxu0 0.0
    %631 = vmatpush1.msra.mxu0 %v48
    %632 = vmatprep.subr.mxu0 0.0
    %633 = vmatpush1.msra.mxu0 %v49
    %634 = vmatprep.subr.mxu0 0.0
    %635 = vmatpush1.msra.mxu0 0.0
    %636 = vmatprep.subr.mxu0 0.0
    %637 = vmatpush1.msra.mxu0 0.0
    %638 = vmatprep.subr.mxu0 0.0
    %639 = vmatpush1.msra.mxu0 0.0
    %640 = vmatprep.subr.mxu0 0.0
    %641 = vmatpush1.msra.mxu0 0.0
    %642 = vmatprep.subr.mxu0 0.0
    %643 = vmatpush1.msra.mxu0 0.0
    %644 = vmatprep.subr.mxu0 0.0
    %645 = vmatpush1.msra.mxu0 0.0
    %646 = vmatprep.subr.mxu0 0.0
    %647 = vmatpush1.msra.mxu0 0.0
    %648 = vmatprep.subr.mxu0 0.0
    %649 = vmatpush1.msra.mxu0 0.0
    %650 = vmatprep.subr.mxu0 0.0
    %651 = vmatpush1.msra.mxu0 0.0
    %652 = vmatprep.subr.mxu0 0.0
    %653 = vmatpush1.msra.mxu0 0.0
    %654 = vmatprep.subr.mxu0 0.0
    %655 = vmatpush1.msra.mxu0 0.0
    %656 = vmatprep.subr.mxu0 0.0
    %657 = vmatpush1.msra.mxu0 0.0
    %658 = vmatprep.subr.mxu0 0.0
    %659 = vmatpush1.msra.mxu0 0.0
    %660 = vmatprep.subr.mxu0 0.0
    %661 = vmatpush1.msra.mxu0 0.0
    %662 = vmatprep.subr.mxu0 0.0
    %663 = vmatpush1.msra.mxu0 0.0
    %664 = vmatprep.subr.mxu0 0.0
    %665 = vmatpush1.msra.mxu0 0.0
    %666 = vmatprep.subr.mxu0 0.0
    %667 = vmatpush1.msra.mxu0 0.0
    %668 = vmatprep.subr.mxu0 0.0
    %669 = vmatpush1.msra.mxu0 0.0
    %670 = vmatprep.subr.mxu0 0.0
    %671 = vmatpush1.msra.mxu0 0.0
    %672 = vmatprep.subr.mxu0 0.0
    %673 = vmatpush1.msra.mxu0 0.0
    %674 = vmatprep.subr.mxu0 0.0
    %675 = vmatpush1.msra.mxu0 0.0
    %676 = vmatprep.subr.mxu0 0.0
    %677 = vmatpush1.msra.mxu0 0.0
    %678 = vmatprep.mubr.f32.mxu0 0.0
    %679 = vmatmul.mubr.f32.gmra.mrb[0].mxu0 %v609
    %v680 = vpop.f32.mrb[0].mxu0
    %v681 = vadd.f32 %v600, %v680
    %v682 = vpop.f32.mrb[0].mxu0
    %683 = vmatprep.mubr.f32.mxu0 0.0
    %684 = vmatmul.mubr.f32.gmra.mrb[0].mxu0 %v612
    %v685 = vpop.f32.mrb[0].mxu0
    %v686 = vadd.f32 %v605, %v685
    %v687 = vpop.f32.mrb[0].mxu0
    %688 = vdwg.mxu0
    %v689 = vld [vmem:[%s522 + $0x2] sm:$0xff]
    %v690 = vld [vmem:[%s522 + $0xa] sm:$0xff]
    %v692 = vsel %vm63, %v689, 0
    %v695 = vsel %vm63, %v690, 0
    %697 = vmatprep.subr.mxu0 0.0
    %698 = vmatpush1.msra.mxu0 %v229
    %699 = vmatprep.subr.mxu0 0.0
    %700 = vmatpush1.msra.mxu0 %v230
    %701 = vmatprep.subr.mxu0 0.0
    %702 = vmatpush1.msra.mxu0 %v231
    %703 = vmatprep.subr.mxu0 0.0
    %704 = vmatpush1.msra.mxu0 %v232
    %705 = vmatprep.subr.mxu0 0.0
    %706 = vmatpush1.msra.mxu0 %v233
    %707 = vmatprep.subr.mxu0 0.0
    %708 = vmatpush1.msra.mxu0 %v234
    %709 = vmatprep.subr.mxu0 0.0
    %710 = vmatpush1.msra.mxu0 %v235
    %711 = vmatprep.subr.mxu0 0.0
    %712 = vmatpush1.msra.mxu0 %v236
    %713 = vmatprep.subr.mxu0 0.0
    %714 = vmatpush1.msra.mxu0 %v237
    %715 = vmatprep.subr.mxu0 0.0
    %716 = vmatpush1.msra.mxu0 %v238
    %717 = vmatprep.subr.mxu0 0.0
    %718 = vmatpush1.msra.mxu0 0.0
    %719 = vmatprep.subr.mxu0 0.0
    %720 = vmatpush1.msra.mxu0 0.0
    %721 = vmatprep.subr.mxu0 0.0
    %722 = vmatpush1.msra.mxu0 0.0
    %723 = vmatprep.subr.mxu0 0.0
    %724 = vmatpush1.msra.mxu0 0.0
    %725 = vmatprep.subr.mxu0 0.0
    %726 = vmatpush1.msra.mxu0 0.0
    %727 = vmatprep.subr.mxu0 0.0
    %728 = vmatpush1.msra.mxu0 0.0
    %729 = vmatprep.subr.mxu0 0.0
    %730 = vmatpush1.msra.mxu0 0.0
    %731 = vmatprep.subr.mxu0 0.0
    %732 = vmatpush1.msra.mxu0 0.0
    %733 = vmatprep.subr.mxu0 0.0
    %734 = vmatpush1.msra.mxu0 0.0
    %735 = vmatprep.subr.mxu0 0.0
    %736 = vmatpush1.msra.mxu0 0.0
    %737 = vmatprep.subr.mxu0 0.0
    %738 = vmatpush1.msra.mxu0 0.0
    %739 = vmatprep.subr.mxu0 0.0
    %740 = vmatpush1.msra.mxu0 0.0
    %741 = vmatprep.subr.mxu0 0.0
    %742 = vmatpush1.msra.mxu0 0.0
    %743 = vmatprep.subr.mxu0 0.0
    %744 = vmatpush1.msra.mxu0 0.0
    %745 = vmatprep.subr.mxu0 0.0
    %746 = vmatpush1.msra.mxu0 0.0
    %747 = vmatprep.subr.mxu0 0.0
    %748 = vmatpush1.msra.mxu0 0.0
    %749 = vmatprep.subr.mxu0 0.0
    %750 = vmatpush1.msra.mxu0 0.0
    %751 = vmatprep.subr.mxu0 0.0
    %752 = vmatpush1.msra.mxu0 0.0
    %753 = vmatprep.subr.mxu0 0.0
    %754 = vmatpush1.msra.mxu0 0.0
    %755 = vmatprep.subr.mxu0 0.0
    %756 = vmatpush1.msra.mxu0 0.0
    %757 = vmatprep.subr.mxu0 0.0
    %758 = vmatpush1.msra.mxu0 0.0
    %759 = vmatprep.subr.mxu0 0.0
    %760 = vmatpush1.msra.mxu0 0.0
    %761 = vmatprep.mubr.f32.mxu0 0.0
    %762 = vmatmul.mubr.f32.gmra.mrb[0].mxu0 %v692
    %v763 = vpop.f32.mrb[0].mxu0
    %v764 = vadd.f32 0.0, %v763
    %v765 = vpop.f32.mrb[0].mxu0
    %766 = vmatprep.mubr.f32.mxu0 0.0
    %767 = vmatmul.mubr.f32.gmra.mrb[0].mxu0 %v695
    %v768 = vpop.f32.mrb[0].mxu0
    %v769 = vadd.f32 0.0, %v768
    %v770 = vpop.f32.mrb[0].mxu0
    %771 = vdwg.mxu0
    %v772 = vadd.f32 %v681, %v764
    %v773 = vadd.f32 %v686, %v769
    %v774 = vld [vmem:[%s522 + $0x3] sm:$0xff]
    %v775 = vld [vmem:[%s522 + $0xb] sm:$0xff]
    %v777 = vsel %vm63, %v774, 0
    %v780 = vsel %vm63, %v775, 0
    %782 = vmatprep.subr.mxu0 0.0
    %783 = vmatpush1.msra.mxu0 %v325
    %784 = vmatprep.subr.mxu0 0.0
    %785 = vmatpush1.msra.mxu0 %v326
    %786 = vmatprep.subr.mxu0 0.0
    %787 = vmatpush1.msra.mxu0 %v327
    %788 = vmatprep.subr.mxu0 0.0
    %789 = vmatpush1.msra.mxu0 %v328
    %790 = vmatprep.subr.mxu0 0.0
    %791 = vmatpush1.msra.mxu0 %v329
    %792 = vmatprep.subr.mxu0 0.0
    %793 = vmatpush1.msra.mxu0 %v330
    %794 = vmatprep.subr.mxu0 0.0
    %795 = vmatpush1.msra.mxu0 %v331
    %796 = vmatprep.subr.mxu0 0.0
    %797 = vmatpush1.msra.mxu0 %v332
    %798 = vmatprep.subr.mxu0 0.0
    %799 = vmatpush1.msra.mxu0 %v333
    %800 = vmatprep.subr.mxu0 0.0
    %801 = vmatpush1.msra.mxu0 %v334
    %802 = vmatprep.subr.mxu0 0.0
    %803 = vmatpush1.msra.mxu0 0.0
    %804 = vmatprep.subr.mxu0 0.0
    %805 = vmatpush1.msra.mxu0 0.0
    %806 = vmatprep.subr.mxu0 0.0
    %807 = vmatpush1.msra.mxu0 0.0
    %808 = vmatprep.subr.mxu0 0.0
    %809 = vmatpush1.msra.mxu0 0.0
    %810 = vmatprep.subr.mxu0 0.0
    %811 = vmatpush1.msra.mxu0 0.0
    %812 = vmatprep.subr.mxu0 0.0
    %813 = vmatpush1.msra.mxu0 0.0
    %814 = vmatprep.subr.mxu0 0.0
    %815 = vmatpush1.msra.mxu0 0.0
    %816 = vmatprep.subr.mxu0 0.0
    %817 = vmatpush1.msra.mxu0 0.0
    %818 = vmatprep.subr.mxu0 0.0
    %819 = vmatpush1.msra.mxu0 0.0
    %820 = vmatprep.subr.mxu0 0.0
    %821 = vmatpush1.msra.mxu0 0.0
    %822 = vmatprep.subr.mxu0 0.0
    %823 = vmatpush1.msra.mxu0 0.0
    %824 = vmatprep.subr.mxu0 0.0
    %825 = vmatpush1.msra.mxu0 0.0
    %826 = vmatprep.subr.mxu0 0.0
    %827 = vmatpush1.msra.mxu0 0.0
    %828 = vmatprep.subr.mxu0 0.0
    %829 = vmatpush1.msra.mxu0 0.0
    %830 = vmatprep.subr.mxu0 0.0
    %831 = vmatpush1.msra.mxu0 0.0
    %832 = vmatprep.subr.mxu0 0.0
    %833 = vmatpush1.msra.mxu0 0.0
    %834 = vmatprep.subr.mxu0 0.0
    %835 = vmatpush1.msra.mxu0 0.0
    %836 = vmatprep.subr.mxu0 0.0
    %837 = vmatpush1.msra.mxu0 0.0
    %838 = vmatprep.subr.mxu0 0.0
    %839 = vmatpush1.msra.mxu0 0.0
    %840 = vmatprep.subr.mxu0 0.0
    %841 = vmatpush1.msra.mxu0 0.0
    %842 = vmatprep.subr.mxu0 0.0
    %843 = vmatpush1.msra.mxu0 0.0
    %844 = vmatprep.subr.mxu0 0.0
    %845 = vmatpush1.msra.mxu0 0.0
    %846 = vmatprep.mubr.f32.mxu0 0.0
    %847 = vmatmul.mubr.f32.gmra.mrb[0].mxu0 %v777
    %v848 = vpop.f32.mrb[0].mxu0
    %v849 = vadd.f32 0.0, %v848
    %v850 = vpop.f32.mrb[0].mxu0
    %851 = vmatprep.mubr.f32.mxu0 0.0
    %852 = vmatmul.mubr.f32.gmra.mrb[0].mxu0 %v780
    %v853 = vpop.f32.mrb[0].mxu0
    %v854 = vadd.f32 0.0, %v853
    %v855 = vpop.f32.mrb[0].mxu0
    %856 = vdwg.mxu0
    %v857 = vadd.f32 %v772, %v849
    %v858 = vadd.f32 %v773, %v854
    %v859 = vld [vmem:[%s522 + $0x4] sm:$0xff]
    %v860 = vld [vmem:[%s522 + $0xc] sm:$0xff]
    %v862 = vsel %vm63, %v859, 0
    %v865 = vsel %vm63, %v860, 0
    %867 = vmatprep.subr.mxu0 0.0
    %868 = vmatpush1.msra.mxu0 %v421
    %869 = vmatprep.subr.mxu0 0.0
    %870 = vmatpush1.msra.mxu0 %v422
    %871 = vmatprep.subr.mxu0 0.0
    %872 = vmatpush1.msra.mxu0 %v423
    %873 = vmatprep.subr.mxu0 0.0
    %874 = vmatpush1.msra.mxu0 %v424
    %875 = vmatprep.subr.mxu0 0.0
    %876 = vmatpush1.msra.mxu0 %v425
    %877 = vmatprep.subr.mxu0 0.0
    %878 = vmatpush1.msra.mxu0 %v426
    %879 = vmatprep.subr.mxu0 0.0
    %880 = vmatpush1.msra.mxu0 %v427
    %881 = vmatprep.subr.mxu0 0.0
    %882 = vmatpush1.msra.mxu0 %v428
    %883 = vmatprep.subr.mxu0 0.0
    %884 = vmatpush1.msra.mxu0 %v429
    %885 = vmatprep.subr.mxu0 0.0
    %886 = vmatpush1.msra.mxu0 %v430
    %887 = vmatprep.subr.mxu0 0.0
    %888 = vmatpush1.msra.mxu0 0.0
    %889 = vmatprep.subr.mxu0 0.0
    %890 = vmatpush1.msra.mxu0 0.0
    %891 = vmatprep.subr.mxu0 0.0
    %892 = vmatpush1.msra.mxu0 0.0
    %893 = vmatprep.subr.mxu0 0.0
    %894 = vmatpush1.msra.mxu0 0.0
    %895 = vmatprep.subr.mxu0 0.0
    %896 = vmatpush1.msra.mxu0 0.0
    %897 = vmatprep.subr.mxu0 0.0
    %898 = vmatpush1.msra.mxu0 0.0
    %899 = vmatprep.subr.mxu0 0.0
    %900 = vmatpush1.msra.mxu0 0.0
    %901 = vmatprep.subr.mxu0 0.0
    %902 = vmatpush1.msra.mxu0 0.0
    %903 = vmatprep.subr.mxu0 0.0
    %904 = vmatpush1.msra.mxu0 0.0
    %905 = vmatprep.subr.mxu0 0.0
    %906 = vmatpush1.msra.mxu0 0.0
    %907 = vmatprep.subr.mxu0 0.0
    %908 = vmatpush1.msra.mxu0 0.0
    %909 = vmatprep.subr.mxu0 0.0
    %910 = vmatpush1.msra.mxu0 0.0
    %911 = vmatprep.subr.mxu0 0.0
    %912 = vmatpush1.msra.mxu0 0.0
    %913 = vmatprep.subr.mxu0 0.0
    %914 = vmatpush1.msra.mxu0 0.0
    %915 = vmatprep.subr.mxu0 0.0
    %916 = vmatpush1.msra.mxu0 0.0
    %917 = vmatprep.subr.mxu0 0.0
    %918 = vmatpush1.msra.mxu0 0.0
    %919 = vmatprep.subr.mxu0 0.0
    %920 = vmatpush1.msra.mxu0 0.0
    %921 = vmatprep.subr.mxu0 0.0
    %922 = vmatpush1.msra.mxu0 0.0
    %923 = vmatprep.subr.mxu0 0.0
    %924 = vmatpush1.msra.mxu0 0.0
    %925 = vmatprep.subr.mxu0 0.0
    %926 = vmatpush1.msra.mxu0 0.0
    %927 = vmatprep.subr.mxu0 0.0
    %928 = vmatpush1.msra.mxu0 0.0
    %929 = vmatprep.subr.mxu0 0.0
    %930 = vmatpush1.msra.mxu0 0.0
    %931 = vmatprep.mubr.f32.mxu0 0.0
    %932 = vmatmul.mubr.f32.gmra.mrb[0].mxu0 %v862
    %v933 = vpop.f32.mrb[0].mxu0
    %v934 = vadd.f32 0.0, %v933
    %v935 = vpop.f32.mrb[0].mxu0
    %936 = vmatprep.mubr.f32.mxu0 0.0
    %937 = vmatmul.mubr.f32.gmra.mrb[0].mxu0 %v865
    %v938 = vpop.f32.mrb[0].mxu0
    %v939 = vadd.f32 0.0, %v938
    %v940 = vpop.f32.mrb[0].mxu0
    %941 = vdwg.mxu0
    %v942 = vadd.f32 %v857, %v934
    %v943 = vadd.f32 %v858, %v939
    %v944 = vadd.f32 %v942, %v943
    %v945 = vrot.slane %v944, 4
    %v946 = vadd.f32 %v944, %v945
    %v947 = vrot.slane %v946, 2
    %v948 = vadd.f32 %v946, %v947
    %v949 = vrot.slane %v948, 1
    %v950 = vadd.f32 %v948, %v949
    %v951 = vadd.f32 %v521, %v950
    %v952 = vld [vmem:[%s2] sm:$0xff]
    %v953 = vld [vmem:[%s2 + $0x8] sm:$0xff]
    %v954 = vld [vmem:[%s2 + $0x10] sm:$0xff]
    %v955 = vld [vmem:[%s2 + $0x18] sm:$0xff]
    %v956 = vld [vmem:[%s2 + $0x20] sm:$0xff]
    %v957 = vld [vmem:[%s2 + $0x28] sm:$0xff]
    %v958 = vld [vmem:[%s2 + $0x30] sm:$0xff]
    %v959 = vld [vmem:[%s2 + $0x38] sm:$0xff]
    %v960 = vld [vmem:[%s2 + $0x40] sm:$0xff]
    %v961 = vld [vmem:[%s2 + $0x48] sm:$0xff]
    %v962 = vld [vmem:[%s2 + $0x50] sm:$0xff]
    %v963 = vld [vmem:[%s2 + $0x58] sm:$0xff]
    %v964 = vld [vmem:[%s2 + $0x60] sm:$0xff]
    %v965 = vld [vmem:[%s2 + $0x68] sm:$0xff]
    %v966 = vld [vmem:[%s2 + $0x70] sm:$0xff]
    %v967 = vld [vmem:[%s2 + $0x78] sm:$0xff]
    %968 = vmatprep.subr.mxu0 0.0
    %969 = vmatpush1.msra.mxu0 %v952
    %970 = vmatprep.subr.mxu0 0.0
    %971 = vmatpush1.msra.mxu0 %v953
    %972 = vmatprep.subr.mxu0 0.0
    %973 = vmatpush1.msra.mxu0 %v954
    %974 = vmatprep.subr.mxu0 0.0
    %975 = vmatpush1.msra.mxu0 %v955
    %976 = vmatprep.subr.mxu0 0.0
    %977 = vmatpush1.msra.mxu0 %v956
    %978 = vmatprep.subr.mxu0 0.0
    %979 = vmatpush1.msra.mxu0 %v957
    %980 = vmatprep.subr.mxu0 0.0
    %981 = vmatpush1.msra.mxu0 %v958
    %982 = vmatprep.subr.mxu0 0.0
    %983 = vmatpush1.msra.mxu0 %v959
    %984 = vmatprep.subr.mxu0 0.0
    %985 = vmatpush1.msra.mxu0 %v960
    %986 = vmatprep.subr.mxu0 0.0
    %987 = vmatpush1.msra.mxu0 %v961
    %988 = vmatprep.subr.mxu0 0.0
    %989 = vmatpush1.msra.mxu0 %v962
    %990 = vmatprep.subr.mxu0 0.0
    %991 = vmatpush1.msra.mxu0 %v963
    %992 = vmatprep.subr.mxu0 0.0
    %993 = vmatpush1.msra.mxu0 %v964
    %994 = vmatprep.subr.mxu0 0.0
    %995 = vmatpush1.msra.mxu0 %v965
    %996 = vmatprep.subr.mxu0 0.0
    %997 = vmatpush1.msra.mxu0 %v966
    %998 = vmatprep.subr.mxu0 0.0
    %999 = vmatpush1.msra.mxu0 %v967
    %1000 = vmatprep.subr.mxu0 0.0
    %1001 = vmatpush1.msra.mxu0 0.0
    %1002 = vmatprep.subr.mxu0 0.0
    %1003 = vmatpush1.msra.mxu0 0.0
    %1004 = vmatprep.subr.mxu0 0.0
    %1005 = vmatpush1.msra.mxu0 0.0
    %1006 = vmatprep.subr.mxu0 0.0
    %1007 = vmatpush1.msra.mxu0 0.0
    %1008 = vmatprep.subr.mxu0 0.0
    %1009 = vmatpush1.msra.mxu0 0.0
    %1010 = vmatprep.subr.mxu0 0.0
    %1011 = vmatpush1.msra.mxu0 0.0
    %1012 = vmatprep.subr.mxu0 0.0
    %1013 = vmatpush1.msra.mxu0 0.0
    %1014 = vmatprep.subr.mxu0 0.0
    %1015 = vmatpush1.msra.mxu0 0.0
    %1016 = vmatprep.subr.mxu0 0.0
    %1017 = vmatpush1.msra.mxu0 0.0
    %1018 = vmatprep.subr.mxu0 0.0
    %1019 = vmatpush1.msra.mxu0 0.0
    %1020 = vmatprep.subr.mxu0 0.0
    %1021 = vmatpush1.msra.mxu0 0.0
    %1022 = vmatprep.subr.mxu0 0.0
    %1023 = vmatpush1.msra.mxu0 0.0
    %1024 = vmatprep.subr.mxu0 0.0
    %1025 = vmatpush1.msra.mxu0 0.0
    %1026 = vmatprep.subr.mxu0 0.0
    %1027 = vmatpush1.msra.mxu0 0.0
    %1028 = vmatprep.subr.mxu0 0.0
    %1029 = vmatpush1.msra.mxu0 0.0
    %1030 = vmatprep.subr.mxu0 0.0
    %1031 = vmatpush1.msra.mxu0 0.0
    %1032 = vmatprep.mubr.f32.mxu0 0.0
    %1033 = vmatmul.mubr.f32.gmra.mrb[0].mxu0 %v951
    %v1034 = vpop.f32.mrb[0].mxu0
    %v1035 = vadd.f32 0.0, %v1034
    %v1036 = vpop.f32.mrb[0].mxu0
    %1037 = vdwg.mxu0
    %v1038 = vrcp.pop 512.0
    %v1039 = vmul.f32 %v1035, %v1038
    %v1040 = vld [vmem:[%s3] sm:$0xff]
    %vm1041 = vcmask 64512
    %v1043 = vsel %vm1041, %v1039, 0
    %1045 = vmatprep.subr.mxu0 0.0
    %1046 = vmatpush1.msra.mxu0 %v1040
    %1047 = vmatprep.subr.mxu0 0.0
    %1048 = vmatpush1.msra.mxu0 0.0
    %1049 = vmatprep.subr.mxu0 0.0
    %1050 = vmatpush1.msra.mxu0 0.0
    %1051 = vmatprep.subr.mxu0 0.0
    %1052 = vmatpush1.msra.mxu0 0.0
    %1053 = vmatprep.subr.mxu0 0.0
    %1054 = vmatpush1.msra.mxu0 0.0
    %1055 = vmatprep.subr.mxu0 0.0
    %1056 = vmatpush1.msra.mxu0 0.0
    %1057 = vmatprep.subr.mxu0 0.0
    %1058 = vmatpush1.msra.mxu0 0.0
    %1059 = vmatprep.subr.mxu0 0.0
    %1060 = vmatpush1.msra.mxu0 0.0
    %1061 = vmatprep.subr.mxu0 0.0
    %1062 = vmatpush1.msra.mxu0 0.0
    %1063 = vmatprep.subr.mxu0 0.0
    %1064 = vmatpush1.msra.mxu0 0.0
    %1065 = vmatprep.subr.mxu0 0.0
    %1066 = vmatpush1.msra.mxu0 0.0
    %1067 = vmatprep.subr.mxu0 0.0
    %1068 = vmatpush1.msra.mxu0 0.0
    %1069 = vmatprep.subr.mxu0 0.0
    %1070 = vmatpush1.msra.mxu0 0.0
    %1071 = vmatprep.subr.mxu0 0.0
    %1072 = vmatpush1.msra.mxu0 0.0
    %1073 = vmatprep.subr.mxu0 0.0
    %1074 = vmatpush1.msra.mxu0 0.0
    %1075 = vmatprep.subr.mxu0 0.0
    %1076 = vmatpush1.msra.mxu0 0.0
    %1077 = vmatprep.subr.mxu0 0.0
    %1078 = vmatpush1.msra.mxu0 0.0
    %1079 = vmatprep.subr.mxu0 0.0
    %1080 = vmatpush1.msra.mxu0 0.0
    %1081 = vmatprep.subr.mxu0 0.0
    %1082 = vmatpush1.msra.mxu0 0.0
    %1083 = vmatprep.subr.mxu0 0.0
    %1084 = vmatpush1.msra.mxu0 0.0
    %1085 = vmatprep.subr.mxu0 0.0
    %1086 = vmatpush1.msra.mxu0 0.0
    %1087 = vmatprep.subr.mxu0 0.0
    %1088 = vmatpush1.msra.mxu0 0.0
    %1089 = vmatprep.subr.mxu0 0.0
    %1090 = vmatpush1.msra.mxu0 0.0
    %1091 = vmatprep.subr.mxu0 0.0
    %1092 = vmatpush1.msra.mxu0 0.0
    %1093 = vmatprep.subr.mxu0 0.0
    %1094 = vmatpush1.msra.mxu0 0.0
    %1095 = vmatprep.subr.mxu0 0.0
    %1096 = vmatpush1.msra.mxu0 0.0
    %1097 = vmatprep.subr.mxu0 0.0
    %1098 = vmatpush1.msra.mxu0 0.0
    %1099 = vmatprep.subr.mxu0 0.0
    %1100 = vmatpush1.msra.mxu0 0.0
    %1101 = vmatprep.subr.mxu0 0.0
    %1102 = vmatpush1.msra.mxu0 0.0
    %1103 = vmatprep.subr.mxu0 0.0
    %1104 = vmatpush1.msra.mxu0 0.0
    %1105 = vmatprep.subr.mxu0 0.0
    %1106 = vmatpush1.msra.mxu0 0.0
    %1107 = vmatprep.subr.mxu0 0.0
    %1108 = vmatpush1.msra.mxu0 0.0
    %1109 = vmatprep.mubr.f32.mxu0 0.0
    %1110 = vmatmul.mubr.f32.gmra.mrb[0].mxu0 %v1043
    %v1111 = vpop.f32.mrb[0].mxu0
    %v1112 = vadd.f32 0.0, %v1111
    %v1113 = vpop.f32.mrb[0].mxu0
    %1114 = vdwg.mxu0
    %v1115 = vlaneseq
    %v1116 = vshrl.u32 %v1115, 7
    %v1117 = vsub.s32 0, %v1116
    %v1118 = vrot.slane %v1112, %v1117
    %v1119 = vsub.f32 %v512, %v1118
    %v1120 = vsub.f32 %v513, %v1118
    %v1121 = vmul.f32 %v1119, %v1119
    %v1122 = vmul.f32 %v1120, %v1120
    %v1123 = vadd.f32 %v1121, %v1122
    %v1124 = vrot.slane %v1123, 4
    %v1125 = vadd.f32 %v1123, %v1124
    %v1126 = vrot.slane %v1125, 2
    %v1127 = vadd.f32 %v1125, %v1126
    %v1128 = vrot.slane %v1127, 1
    %v1129 = vadd.f32 %v1127, %v1128
    %v1130 = vadd.f32 %v1129, 0.0
    %v1131 = vsub.f32 %v942, %v1118
    %v1132 = vsub.f32 %v943, %v1118
    %v1133 = vmul.f32 %v1131, %v1131
    %v1134 = vmul.f32 %v1132, %v1132
    %v1135 = vadd.f32 %v1133, %v1134
    %v1136 = vrot.slane %v1135, 4
    %v1137 = vadd.f32 %v1135, %v1136
    %v1138 = vrot.slane %v1137, 2
    %v1139 = vadd.f32 %v1137, %v1138
    %v1140 = vrot.slane %v1139, 1
    %v1141 = vadd.f32 %v1139, %v1140
    %v1142 = vadd.f32 %v1130, %v1141
    %1143 = vmatprep.subr.mxu0 0.0
    %1144 = vmatpush1.msra.mxu0 %v952
    %1145 = vmatprep.subr.mxu0 0.0
    %1146 = vmatpush1.msra.mxu0 %v953
    %1147 = vmatprep.subr.mxu0 0.0
    %1148 = vmatpush1.msra.mxu0 %v954
    %1149 = vmatprep.subr.mxu0 0.0
    %1150 = vmatpush1.msra.mxu0 %v955
    %1151 = vmatprep.subr.mxu0 0.0
    %1152 = vmatpush1.msra.mxu0 %v956
    %1153 = vmatprep.subr.mxu0 0.0
    %1154 = vmatpush1.msra.mxu0 %v957
    %1155 = vmatprep.subr.mxu0 0.0
    %1156 = vmatpush1.msra.mxu0 %v958
    %1157 = vmatprep.subr.mxu0 0.0
    %1158 = vmatpush1.msra.mxu0 %v959
    %1159 = vmatprep.subr.mxu0 0.0
    %1160 = vmatpush1.msra.mxu0 %v960
    %1161 = vmatprep.subr.mxu0 0.0
    %1162 = vmatpush1.msra.mxu0 %v961
    %1163 = vmatprep.subr.mxu0 0.0
    %1164 = vmatpush1.msra.mxu0 %v962
    %1165 = vmatprep.subr.mxu0 0.0
    %1166 = vmatpush1.msra.mxu0 %v963
    %1167 = vmatprep.subr.mxu0 0.0
    %1168 = vmatpush1.msra.mxu0 %v964
    %1169 = vmatprep.subr.mxu0 0.0
    %1170 = vmatpush1.msra.mxu0 %v965
    %1171 = vmatprep.subr.mxu0 0.0
    %1172 = vmatpush1.msra.mxu0 %v966
    %1173 = vmatprep.subr.mxu0 0.0
    %1174 = vmatpush1.msra.mxu0 %v967
    %1175 = vmatprep.subr.mxu0 0.0
    %1176 = vmatpush1.msra.mxu0 0.0
    %1177 = vmatprep.subr.mxu0 0.0
    %1178 = vmatpush1.msra.mxu0 0.0
    %1179 = vmatprep.subr.mxu0 0.0
    %1180 = vmatpush1.msra.mxu0 0.0
    %1181 = vmatprep.subr.mxu0 0.0
    %1182 = vmatpush1.msra.mxu0 0.0
    %1183 = vmatprep.subr.mxu0 0.0
    %1184 = vmatpush1.msra.mxu0 0.0
    %1185 = vmatprep.subr.mxu0 0.0
    %1186 = vmatpush1.msra.mxu0 0.0
    %1187 = vmatprep.subr.mxu0 0.0
    %1188 = vmatpush1.msra.mxu0 0.0
    %1189 = vmatprep.subr.mxu0 0.0
    %1190 = vmatpush1.msra.mxu0 0.0
    %1191 = vmatprep.subr.mxu0 0.0
    %1192 = vmatpush1.msra.mxu0 0.0
    %1193 = vmatprep.subr.mxu0 0.0
    %1194 = vmatpush1.msra.mxu0 0.0
    %1195 = vmatprep.subr.mxu0 0.0
    %1196 = vmatpush1.msra.mxu0 0.0
    %1197 = vmatprep.subr.mxu0 0.0
    %1198 = vmatpush1.msra.mxu0 0.0
    %1199 = vmatprep.subr.mxu0 0.0
    %1200 = vmatpush1.msra.mxu0 0.0
    %1201 = vmatprep.subr.mxu0 0.0
    %1202 = vmatpush1.msra.mxu0 0.0
    %1203 = vmatprep.subr.mxu0 0.0
    %1204 = vmatpush1.msra.mxu0 0.0
    %1205 = vmatprep.subr.mxu0 0.0
    %1206 = vmatpush1.msra.mxu0 0.0
    %1207 = vmatprep.mubr.f32.mxu0 0.0
    %1208 = vmatmul.mubr.f32.gmra.mrb[0].mxu0 %v1142
    %v1209 = vpop.f32.mrb[0].mxu0
    %v1210 = vadd.f32 0.0, %v1209
    %v1211 = vpop.f32.mrb[0].mxu0
    %1212 = vdwg.mxu0
    %v1213 = vmul.f32 %v1210, %v1038
    %v1214 = vld [vmem:[%s4] sm:$0x1]
    %v1215 = vadd.f32 %v1213, 1e-05
    %v1216 = vrsqrt.pop %v1215
    %v1217 = vmul.f32 %v1214, %v1216
    %v1218 = vld [vmem:[%s5] sm:$0x1]
    %v1219 = vmul.f32 %v1039, %v1217
    %v1220 = vsub.f32 %v1218, %v1219
    %v1222 = vsel %vm1041, %v1217, 0
    %1224 = vmatprep.subr.mxu0 0.0
    %1225 = vmatpush1.msra.mxu0 %v1040
    %1226 = vmatprep.subr.mxu0 0.0
    %1227 = vmatpush1.msra.mxu0 0.0
    %1228 = vmatprep.subr.mxu0 0.0
    %1229 = vmatpush1.msra.mxu0 0.0
    %1230 = vmatprep.subr.mxu0 0.0
    %1231 = vmatpush1.msra.mxu0 0.0
    %1232 = vmatprep.subr.mxu0 0.0
    %1233 = vmatpush1.msra.mxu0 0.0
    %1234 = vmatprep.subr.mxu0 0.0
    %1235 = vmatpush1.msra.mxu0 0.0
    %1236 = vmatprep.subr.mxu0 0.0
    %1237 = vmatpush1.msra.mxu0 0.0
    %1238 = vmatprep.subr.mxu0 0.0
    %1239 = vmatpush1.msra.mxu0 0.0
    %1240 = vmatprep.subr.mxu0 0.0
    %1241 = vmatpush1.msra.mxu0 0.0
    %1242 = vmatprep.subr.mxu0 0.0
    %1243 = vmatpush1.msra.mxu0 0.0
    %1244 = vmatprep.subr.mxu0 0.0
    %1245 = vmatpush1.msra.mxu0 0.0
    %1246 = vmatprep.subr.mxu0 0.0
    %1247 = vmatpush1.msra.mxu0 0.0
    %1248 = vmatprep.subr.mxu0 0.0
    %1249 = vmatpush1.msra.mxu0 0.0
    %1250 = vmatprep.subr.mxu0 0.0
    %1251 = vmatpush1.msra.mxu0 0.0
    %1252 = vmatprep.subr.mxu0 0.0
    %1253 = vmatpush1.msra.mxu0 0.0
    %1254 = vmatprep.subr.mxu0 0.0
    %1255 = vmatpush1.msra.mxu0 0.0
    %1256 = vmatprep.subr.mxu0 0.0
    %1257 = vmatpush1.msra.mxu0 0.0
    %1258 = vmatprep.subr.mxu0 0.0
    %1259 = vmatpush1.msra.mxu0 0.0
    %1260 = vmatprep.subr.mxu0 0.0
    %1261 = vmatpush1.msra.mxu0 0.0
    %1262 = vmatprep.subr.mxu0 0.0
    %1263 = vmatpush1.msra.mxu0 0.0
    %1264 = vmatprep.subr.mxu0 0.0
    %1265 = vmatpush1.msra.mxu0 0.0
    %1266 = vmatprep.subr.mxu0 0.0
    %1267 = vmatpush1.msra.mxu0 0.0
    %1268 = vmatprep.subr.mxu0 0.0
    %1269 = vmatpush1.msra.mxu0 0.0
    %1270 = vmatprep.subr.mxu0 0.0
    %1271 = vmatpush1.msra.mxu0 0.0
    %1272 = vmatprep.subr.mxu0 0.0
    %1273 = vmatpush1.msra.mxu0 0.0
    %1274 = vmatprep.subr.mxu0 0.0
    %1275 = vmatpush1.msra.mxu0 0.0
    %1276 = vmatprep.subr.mxu0 0.0
    %1277 = vmatpush1.msra.mxu0 0.0
    %1278 = vmatprep.subr.mxu0 0.0
    %1279 = vmatpush1.msra.mxu0 0.0
    %1280 = vmatprep.subr.mxu0 0.0
    %1281 = vmatpush1.msra.mxu0 0.0
    %1282 = vmatprep.subr.mxu0 0.0
    %1283 = vmatpush1.msra.mxu0 0.0
    %1284 = vmatprep.subr.mxu0 0.0
    %1285 = vmatpush1.msra.mxu0 0.0
    %1286 = vmatprep.subr.mxu0 0.0
    %1287 = vmatpush1.msra.mxu0 0.0
    %1288 = vmatprep.mubr.f32.mxu0 0.0
    %1289 = vmatmul.mubr.f32.gmra.mrb[0].mxu0 %v1222
    %v1290 = vpop.f32.mrb[0].mxu0
    %v1291 = vadd.f32 0.0, %v1290
    %v1292 = vpop.f32.mrb[0].mxu0
    %1293 = vdwg.mxu0
    %v1295 = vsel %vm1041, %v1220, 0
    %1297 = vmatprep.subr.mxu0 0.0
    %1298 = vmatpush1.msra.mxu0 %v1040
    %1299 = vmatprep.subr.mxu0 0.0
    %1300 = vmatpush1.msra.mxu0 0.0
    %1301 = vmatprep.subr.mxu0 0.0
    %1302 = vmatpush1.msra.mxu0 0.0
    %1303 = vmatprep.subr.mxu0 0.0
    %1304 = vmatpush1.msra.mxu0 0.0
    %1305 = vmatprep.subr.mxu0 0.0
    %1306 = vmatpush1.msra.mxu0 0.0
    %1307 = vmatprep.subr.mxu0 0.0
    %1308 = vmatpush1.msra.mxu0 0.0
    %1309 = vmatprep.subr.mxu0 0.0
    %1310 = vmatpush1.msra.mxu0 0.0
    %1311 = vmatprep.subr.mxu0 0.0
    %1312 = vmatpush1.msra.mxu0 0.0
    %1313 = vmatprep.subr.mxu0 0.0
    %1314 = vmatpush1.msra.mxu0 0.0
    %1315 = vmatprep.subr.mxu0 0.0
    %1316 = vmatpush1.msra.mxu0 0.0
    %1317 = vmatprep.subr.mxu0 0.0
    %1318 = vmatpush1.msra.mxu0 0.0
    %1319 = vmatprep.subr.mxu0 0.0
    %1320 = vmatpush1.msra.mxu0 0.0
    %1321 = vmatprep.subr.mxu0 0.0
    %1322 = vmatpush1.msra.mxu0 0.0
    %1323 = vmatprep.subr.mxu0 0.0
    %1324 = vmatpush1.msra.mxu0 0.0
    %1325 = vmatprep.subr.mxu0 0.0
    %1326 = vmatpush1.msra.mxu0 0.0
    %1327 = vmatprep.subr.mxu0 0.0
    %1328 = vmatpush1.msra.mxu0 0.0
    %1329 = vmatprep.subr.mxu0 0.0
    %1330 = vmatpush1.msra.mxu0 0.0
    %1331 = vmatprep.subr.mxu0 0.0
    %1332 = vmatpush1.msra.mxu0 0.0
    %1333 = vmatprep.subr.mxu0 0.0
    %1334 = vmatpush1.msra.mxu0 0.0
    %1335 = vmatprep.subr.mxu0 0.0
    %1336 = vmatpush1.msra.mxu0 0.0
    %1337 = vmatprep.subr.mxu0 0.0
    %1338 = vmatpush1.msra.mxu0 0.0
    %1339 = vmatprep.subr.mxu0 0.0
    %1340 = vmatpush1.msra.mxu0 0.0
    %1341 = vmatprep.subr.mxu0 0.0
    %1342 = vmatpush1.msra.mxu0 0.0
    %1343 = vmatprep.subr.mxu0 0.0
    %1344 = vmatpush1.msra.mxu0 0.0
    %1345 = vmatprep.subr.mxu0 0.0
    %1346 = vmatpush1.msra.mxu0 0.0
    %1347 = vmatprep.subr.mxu0 0.0
    %1348 = vmatpush1.msra.mxu0 0.0
    %1349 = vmatprep.subr.mxu0 0.0
    %1350 = vmatpush1.msra.mxu0 0.0
    %1351 = vmatprep.subr.mxu0 0.0
    %1352 = vmatpush1.msra.mxu0 0.0
    %1353 = vmatprep.subr.mxu0 0.0
    %1354 = vmatpush1.msra.mxu0 0.0
    %1355 = vmatprep.subr.mxu0 0.0
    %1356 = vmatpush1.msra.mxu0 0.0
    %1357 = vmatprep.subr.mxu0 0.0
    %1358 = vmatpush1.msra.mxu0 0.0
    %1359 = vmatprep.subr.mxu0 0.0
    %1360 = vmatpush1.msra.mxu0 0.0
    %1361 = vmatprep.mubr.f32.mxu0 0.0
    %1362 = vmatmul.mubr.f32.gmra.mrb[0].mxu0 %v1295
    %v1363 = vpop.f32.mrb[0].mxu0
    %v1364 = vadd.f32 0.0, %v1363
    %v1365 = vpop.f32.mrb[0].mxu0
    %1366 = vdwg.mxu0
    %v1367 = vlaneseq
    %v1368 = vshrl.u32 %v1367, 7
    %v1369 = vsub.s32 0, %v1368
    %v1370 = vrot.slane %v1291, %v1369
    %v1371 = vmul.f32 %v512, %v1370
    %v1372 = vmul.f32 %v513, %v1370
    %v1373 = vlaneseq
    %v1374 = vshrl.u32 %v1373, 7
    %v1375 = vsub.s32 0, %v1374
    %v1376 = vrot.slane %v1364, %v1375
    %v1377 = vadd.f32 %v1371, %v1376
    %v1378 = vadd.f32 %v1372, %v1376
    %v1379 = vmax.f32 %v1377, 0.0
    %v1380 = vmax.f32 %v1378, 0.0
    %1381 = vst [vmem:[#allocation5] sm:$0xff] %v1379
    %1382 = vst [vmem:[#allocation5 + $0x8] sm:$0xff] %v1380
    %v1383 = vmul.f32 %v942, %v1370
    %v1384 = vmul.f32 %v943, %v1370
    %v1385 = vadd.f32 %v1383, %v1376
    %v1386 = vadd.f32 %v1384, %v1376
    %v1387 = vmax.f32 %v1385, 0.0
    %v1388 = vmax.f32 %v1386, 0.0
    %s1389 = scalar_lea.vmem [#allocation5], 16
    %1390 = vst [vmem:[%s1389] sm:$0xff] %v1387
    %1391 = vst [vmem:[%s1389 + $0x8] sm:$0xff] %v1388
    // Predicated region
    $region30: #{tpu_custom_call.1} parent=1 // pred_check
      _
    $region31: #{tpu_custom_call.1} parent=1 // pred_check_branch
      %1393 = sbr.rel (0) target = $region33
    $region32: #{tpu_custom_call.1} parent=1 // pred_region
      %s1395 = ssub.s32 512, 512
      %1396 = vsyncadd [#allocation4], %s1395
      %s1397 = sshll.u32 [#allocation5], 4
      %s1398 = int_to_ptr.vmem [resolvable:$true] %s1397
      %1403 = dma.vmem_to_hbm [thread:$0]  %s1398, 512, %s6, [#allocation4], 128, 128, 8
    $region33: #{tpu_custom_call.1} parent=1 // pred_fallthru
      _
    // Predicated region
    $region34: #{tpu_custom_call.1} parent=1 // pred_check
      _
    $region35: #{tpu_custom_call.1} parent=1 // pred_check_branch
      %1405 = sbr.rel (0) target = $region37
    $region36: #{tpu_custom_call.1} parent=1 // pred_region
      %1406 = dma.done [#allocation4], 512
    $region37: #{tpu_custom_call.1} parent=1 // pred_fallthru
      _
    %1407 = vsyncpa [#allocation3], 1
    %1408 = vsyncpa [#allocation4], 1

</llo_original>
